<compile_context>
chip_gen: v7x
topology: tpu7x:2x2x1
jax: 0.10.0
libtpu: 0.0.40
codegen_flags: <defaults>
</compile_context>

<pallas_src>
import functools

import jax
import jax.numpy as jnp
from jax.experimental import pallas as pl
from jax.experimental.pallas import tpu as pltpu


def _scatter_matrices(scale, W, dtype):
    """One-hot matrices M[c*s+e] of shape (W, s*W*s) with
    M[c*s+e, w, c*(W*s) + w*s + e] = 1.  Built once in the wrapper; exact for
    f32/bf16 because every output element has exactly one contributor."""
    s = scale
    Ws = W * s
    j = jnp.arange(s * s, dtype=jnp.int32)
    c = j // s
    e = j % s
    w = jnp.arange(W, dtype=jnp.int32)
    dest = c[:, None] * Ws + w[None, :] * s + e[:, None]            # (s^2, W)
    cols = jnp.arange(s * Ws, dtype=jnp.int32)
    return (dest[:, :, None] == cols[None, None, :]).astype(dtype)  # (s^2, W, s^2*W)


def _padded_bytes(shape, dtype):
    """VMEM footprint of one buffer: (sublane, lane) padding on trailing dims."""
    itemsize = jnp.dtype(dtype).itemsize
    pack = 8 * max(1, 4 // itemsize)            # 8 (f32) / 16 (bf16)
    lead = 1
    for d in shape[:-2]:
        lead *= int(d)
    sl = -(-int(shape[-2]) // pack) * pack
    ln = -(-int(shape[-1]) // 128) * 128
    return lead * sl * ln * itemsize


def _vmem_capacity_bytes():
    try:
        return int(pltpu.get_tpu_info().vmem_capacity_bytes)
    except Exception:
        return 64 << 20   # conservative fallback (v7x-sized VMEM)


def _pixel_shuffle3d_kernel(x_ref, m_ref, o_ref, *, scale, h):
    """One grid step: one (batch, out-channel) group, one depth chunk.

    x_ref : (1, s^3, Dt*H, W)       input channels for this depth chunk
    m_ref : (s^2, W, s^2*W)         factorized one-hot scatter (VMEM resident)
    o_ref : (1, Dt, s*H, s^2*W)     output rows; dim2 index = a*H + h,
                                    dim3 index = c*(W*s) + w*s + e
    """
    s = scale
    s2 = s * s
    dt = o_ref.shape[1]
    k = m_ref.shape[-1]
    for a in range(s):                       # depth offset: contiguous store slab
        # One accumulator live at a time; M = Dt*H rows per dot keeps the MXU busy.
        acc = jnp.dot(x_ref[0, a * s2, :, :], m_ref[0, :, :],
                      preferred_element_type=jnp.float32)
        for j in range(1, s2):               # fused (height-phase, width-phase)
            acc = acc + jnp.dot(x_ref[0, a * s2 + j, :, :], m_ref[j, :, :],
                                preferred_element_type=jnp.float32)
        # (Dt*H, K) -> (Dt, H, K): pure sublane regrouping (free when H % 8 == 0),
        # then one contiguous, statically-sliced, lane-dense store per depth offset.
        o_ref[0, :, a * h:(a + 1) * h, :] = acc.reshape(dt, h, k).astype(o_ref.dtype)


def pixel_shuffle3d(x, scale, *, d_block=None):
    """Pallas TPU implementation of PixelShuffle3d.forward (NCDHW layout)."""
    B, C, D, H, W = x.shape
    s = int(scale)
    if s == 1:
        return x
    assert C % (s ** 3) == 0, "channels must be divisible by scale**3"
    assert jnp.issubdtype(x.dtype, jnp.floating), "floating-point inputs only"
    # TODO(synk): integer dtypes would need a pure copy/strided-store path (no MXU).

    n_out = C // s ** 3
    G = B * n_out
    K = s * s * W                        # = s^2*W : one (a, h) output row group
    itemsize = jnp.dtype(x.dtype).itemsize

    m = _scatter_matrices(s, W, x.dtype)             # (s^2, W, s^2*W), KB-scale
    m_bytes = _padded_bytes(m.shape, x.dtype)

    cap = _vmem_capacity_bytes()
    usable = int(cap * 0.75)             # ~96 MiB on v5e/v6e, ~48 MiB on v7x
    if 2 * m_bytes > usable // 2:
        raise ValueError(
            f"factorized scatter ({m_bytes} B, double-buffered) does not fit the "
            f"VMEM budget ({usable} B); reduce scale or W.")

    def need(dt):
        in_blk = _padded_bytes((1, s ** 3, dt * H, W), x.dtype)
        out_blk = _padded_bytes((1, dt, s * H, K), x.dtype)
        acc_blk = _padded_bytes((dt * H, K), jnp.float32)
        # in/out/scatter are double-buffered by the pipeline; + acc + headroom.
        return 2 * (in_blk + out_blk + m_bytes) + acc_blk + (2 << 20)

    if d_block is not None:
        assert D % d_block == 0, "d_block must divide D"
        cands = [int(d_block)]
    else:
        # Dt is a divisor of D; (Dt*H) % 8 == 0 (or Dt == D) keeps the input
        # block's sublane dim legal under the (8, 128) block-tiling rule.
        cands = [d for d in range(1, D + 1)
                 if D % d == 0 and (d == D or (d * H) % 8 == 0)]
    fitting = [d for d in cands if need(d) <= usable]
    Dt = max(fitting) if fitting else min(cands)
    if need(Dt) > int(cap * 0.9):
        raise ValueError(
            f"PixelShuffle3d blocks do not fit VMEM: need {need(Dt)} B at Dt={Dt} "
            f"vs capacity {cap} B; reduce H*W or pass a smaller d_block.")
    vmem_limit = int(min(cap, need(Dt) + (8 << 20)))

    # Free row-major regrouping: (B, C, D, H, W) -> (B*n_out, s^3, D*H, W).
    x2 = x.reshape(G, s ** 3, D * H, W)

    grid = (G, D // Dt)
    out_elems = G * D * s ** 3 * H * W
    cost = pl.CostEstimate(
        flops=2 * G * D * H * (W ** 2) * (s ** 5),
        transcendentals=0,
        bytes_accessed=(x.size + out_elems) * itemsize + m.size * itemsize,
    )

    out3 = pl.pallas_call(
        functools.partial(_pixel_shuffle3d_kernel, scale=s, h=H),
        out_shape=jax.ShapeDtypeStruct((G, D, s * H, K), x.dtype),
        grid_spec=pltpu.PrefetchScalarGridSpec(
            num_scalar_prefetch=0,
            grid=grid,
            in_specs=[
                pl.BlockSpec((1, s ** 3, Dt * H, W), lambda g, dc: (g, 0, dc, 0)),
                # constant index_map -> fetched once, stays VMEM-resident (tiny).
                pl.BlockSpec((s * s, W, K), lambda g, dc: (0, 0, 0)),
            ],
            out_specs=pl.BlockSpec((1, Dt, s * H, K), lambda g, dc: (g, dc, 0, 0)),
        ),
        compiler_params=pltpu.CompilerParams(
            dimension_semantics=("parallel", "parallel"),
            vmem_limit_bytes=vmem_limit,
        ),
        cost_estimate=cost,
    )(x2, m)

    # Row-major regrouping back to (B, n_out, D*s, H*s, W*s): the flat enumeration
    # (b, n, d, a, h, c, w, e) of out3 matches the canonical output exactly.
    return out3.reshape(B, n_out, D * s, H * s, W * s)


def _reference(x, scale):
    """Pure-JAX mirror of the PyTorch view/permute/view."""
    B, C, D, H, W = x.shape
    n_out = C // scale ** 3
    r = x.reshape(B, n_out, scale, scale, scale, D, H, W)
    r = jnp.transpose(r, (0, 1, 5, 2, 6, 3, 7, 4))
    return r.reshape(B, n_out, D * scale, H * scale, W * scale)


if __name__ == "__main__":
    key = jax.random.PRNGKey(0)

    scale = 2
    B, n_out, D, H, W = 2, 2, 8, 16, 16      # C = 16; M = Dt*H = 128; grid = (4, 1)
    C = n_out * scale ** 3

    x = jax.random.normal(key, (B, C, D, H, W), dtype=jnp.float32)

    out = jax.block_until_ready(pixel_shuffle3d(x, scale))
    ref = _reference(x, scale)
    assert out.shape == ref.shape and out.dtype == ref.dtype, (out.shape, out.dtype)
    assert bool(jnp.allclose(out, ref, atol=1e-6, rtol=1e-6)), "f32 mismatch vs reference"

    # bf16 path: input is NOT upcast; one-hot scatter + f32 accumulation is exact,
    # so results are bit-equal to the pure reshape/permute reference.
    xb = x.astype(jnp.bfloat16)
    outb = jax.block_until_ready(pixel_shuffle3d(xb, scale))
    refb = _reference(xb, scale)
    assert outb.dtype == jnp.bfloat16
    assert bool(jnp.array_equal(outb, refb)), "bf16 mismatch vs reference"

    print("KERNEL_OK")
</pallas_src>

<mosaic_0001>
module attributes {stable_mosaic.version = 11 : i64} {
  func.func @_pixel_shuffle3d_kernel(%arg0: i32, %arg1: i32, %arg2: memref<1x8x128x16xf32, #tpu.memory_space<vmem>>, %arg3: memref<4x16x64xf32, #tpu.memory_space<vmem>>, %arg4: memref<1x8x32x64xf32, #tpu.memory_space<vmem>>) attributes {dimension_semantics = [#tpu.dimension_semantics<parallel>, #tpu.dimension_semantics<parallel>], iteration_bounds = array<i64: 4, 1>, scalar_prefetch = 0 : i64, scratch_operands = 0 : i64, tpu.core_type = #tpu.core_type<tc>, window_params = [{transform_indices = @transform_0, window_bounds = array<i64: 1, 8, 128, 16>}, {pipeline_mode = #tpu.pipeline_mode<synchronous>, transform_indices = @transform_1, window_bounds = array<i64: 4, 16, 64>}, {transform_indices = @transform_2, window_bounds = array<i64: 1, 8, 32, 64>}]} {
    %c0 = arith.constant 0 : index
    %c0_0 = arith.constant 0 : index
    %c0_1 = arith.constant 0 : index
    %c0_2 = arith.constant 0 : index
    %0 = vector.load %arg2[%c0, %c0_0, %c0_1, %c0_2] : memref<1x8x128x16xf32, #tpu.memory_space<vmem>>, vector<1x1x128x16xf32>
    %1 = vector.shape_cast %0 : vector<1x1x128x16xf32> to vector<128x16xf32>
    %c0_3 = arith.constant 0 : index
    %c0_4 = arith.constant 0 : index
    %c0_5 = arith.constant 0 : index
    %2 = vector.load %arg3[%c0_3, %c0_4, %c0_5] : memref<4x16x64xf32, #tpu.memory_space<vmem>>, vector<1x16x64xf32>
    %3 = vector.shape_cast %2 : vector<1x16x64xf32> to vector<16x64xf32>
    %cst = arith.constant dense<0.000000e+00> : vector<128x64xf32>
    %4 = tpu.matmul %1, %3, %cst {dimension_numbers = #tpu.dot_dimension_numbers<[1], [0], [0], [1], [0, 0, 1, 1], [], []>} : vector<128x16xf32>, vector<16x64xf32>, vector<128x64xf32> -> vector<128x64xf32>
    %c0_6 = arith.constant 0 : index
    %c1 = arith.constant 1 : index
    %c0_7 = arith.constant 0 : index
    %c0_8 = arith.constant 0 : index
    %5 = vector.load %arg2[%c0_6, %c1, %c0_7, %c0_8] : memref<1x8x128x16xf32, #tpu.memory_space<vmem>>, vector<1x1x128x16xf32>
    %6 = vector.shape_cast %5 : vector<1x1x128x16xf32> to vector<128x16xf32>
    %c1_9 = arith.constant 1 : index
    %c0_10 = arith.constant 0 : index
    %c0_11 = arith.constant 0 : index
    %7 = vector.load %arg3[%c1_9, %c0_10, %c0_11] : memref<4x16x64xf32, #tpu.memory_space<vmem>>, vector<1x16x64xf32>
    %8 = vector.shape_cast %7 : vector<1x16x64xf32> to vector<16x64xf32>
    %cst_12 = arith.constant dense<0.000000e+00> : vector<128x64xf32>
    %9 = tpu.matmul %6, %8, %cst_12 {dimension_numbers = #tpu.dot_dimension_numbers<[1], [0], [0], [1], [0, 0, 1, 1], [], []>} : vector<128x16xf32>, vector<16x64xf32>, vector<128x64xf32> -> vector<128x64xf32>
    %10 = arith.addf %4, %9 : vector<128x64xf32>
    %c0_13 = arith.constant 0 : index
    %c2 = arith.constant 2 : index
    %c0_14 = arith.constant 0 : index
    %c0_15 = arith.constant 0 : index
    %11 = vector.load %arg2[%c0_13, %c2, %c0_14, %c0_15] : memref<1x8x128x16xf32, #tpu.memory_space<vmem>>, vector<1x1x128x16xf32>
    %12 = vector.shape_cast %11 : vector<1x1x128x16xf32> to vector<128x16xf32>
    %c2_16 = arith.constant 2 : index
    %c0_17 = arith.constant 0 : index
    %c0_18 = arith.constant 0 : index
    %13 = vector.load %arg3[%c2_16, %c0_17, %c0_18] : memref<4x16x64xf32, #tpu.memory_space<vmem>>, vector<1x16x64xf32>
    %14 = vector.shape_cast %13 : vector<1x16x64xf32> to vector<16x64xf32>
    %cst_19 = arith.constant dense<0.000000e+00> : vector<128x64xf32>
    %15 = tpu.matmul %12, %14, %cst_19 {dimension_numbers = #tpu.dot_dimension_numbers<[1], [0], [0], [1], [0, 0, 1, 1], [], []>} : vector<128x16xf32>, vector<16x64xf32>, vector<128x64xf32> -> vector<128x64xf32>
    %16 = arith.addf %10, %15 : vector<128x64xf32>
    %c0_20 = arith.constant 0 : index
    %c3 = arith.constant 3 : index
    %c0_21 = arith.constant 0 : index
    %c0_22 = arith.constant 0 : index
    %17 = vector.load %arg2[%c0_20, %c3, %c0_21, %c0_22] : memref<1x8x128x16xf32, #tpu.memory_space<vmem>>, vector<1x1x128x16xf32>
    %18 = vector.shape_cast %17 : vector<1x1x128x16xf32> to vector<128x16xf32>
    %c3_23 = arith.constant 3 : index
    %c0_24 = arith.constant 0 : index
    %c0_25 = arith.constant 0 : index
    %19 = vector.load %arg3[%c3_23, %c0_24, %c0_25] : memref<4x16x64xf32, #tpu.memory_space<vmem>>, vector<1x16x64xf32>
    %20 = vector.shape_cast %19 : vector<1x16x64xf32> to vector<16x64xf32>
    %cst_26 = arith.constant dense<0.000000e+00> : vector<128x64xf32>
    %21 = tpu.matmul %18, %20, %cst_26 {dimension_numbers = #tpu.dot_dimension_numbers<[1], [0], [0], [1], [0, 0, 1, 1], [], []>} : vector<128x16xf32>, vector<16x64xf32>, vector<128x64xf32> -> vector<128x64xf32>
    %22 = arith.addf %16, %21 : vector<128x64xf32>
    %23 = vector.shape_cast %22 : vector<128x64xf32> to vector<8x16x64xf32>
    %c0_27 = arith.constant 0 : index
    %c0_28 = arith.constant 0 : index
    %c0_29 = arith.constant 0 : index
    %c0_30 = arith.constant 0 : index
    %24 = vector.load %arg4[%c0_27, %c0_28, %c0_29, %c0_30] : memref<1x8x32x64xf32, #tpu.memory_space<vmem>>, vector<1x8x16x64xf32>
    %25 = vector.shape_cast %24 : vector<1x8x16x64xf32> to vector<8x16x64xf32>
    %26 = vector.shape_cast %23 : vector<8x16x64xf32> to vector<1x8x16x64xf32>
    tpu.vector_store %arg4[%c0_27, %c0_28, %c0_29, %c0_30], %26 {strides = array<i32>} : memref<1x8x32x64xf32, #tpu.memory_space<vmem>>, vector<1x8x16x64xf32>,
    %c0_31 = arith.constant 0 : index
    %c4 = arith.constant 4 : index
    %c0_32 = arith.constant 0 : index
    %c0_33 = arith.constant 0 : index
    %27 = vector.load %arg2[%c0_31, %c4, %c0_32, %c0_33] : memref<1x8x128x16xf32, #tpu.memory_space<vmem>>, vector<1x1x128x16xf32>
    %28 = vector.shape_cast %27 : vector<1x1x128x16xf32> to vector<128x16xf32>
    %c0_34 = arith.constant 0 : index
    %c0_35 = arith.constant 0 : index
    %c0_36 = arith.constant 0 : index
    %29 = vector.load %arg3[%c0_34, %c0_35, %c0_36] : memref<4x16x64xf32, #tpu.memory_space<vmem>>, vector<1x16x64xf32>
    %30 = vector.shape_cast %29 : vector<1x16x64xf32> to vector<16x64xf32>
    %cst_37 = arith.constant dense<0.000000e+00> : vector<128x64xf32>
    %31 = tpu.matmul %28, %30, %cst_37 {dimension_numbers = #tpu.dot_dimension_numbers<[1], [0], [0], [1], [0, 0, 1, 1], [], []>} : vector<128x16xf32>, vector<16x64xf32>, vector<128x64xf32> -> vector<128x64xf32>
    %c0_38 = arith.constant 0 : index
    %c5 = arith.constant 5 : index
    %c0_39 = arith.constant 0 : index
    %c0_40 = arith.constant 0 : index
    %32 = vector.load %arg2[%c0_38, %c5, %c0_39, %c0_40] : memref<1x8x128x16xf32, #tpu.memory_space<vmem>>, vector<1x1x128x16xf32>
    %33 = vector.shape_cast %32 : vector<1x1x128x16xf32> to vector<128x16xf32>
    %c1_41 = arith.constant 1 : index
    %c0_42 = arith.constant 0 : index
    %c0_43 = arith.constant 0 : index
    %34 = vector.load %arg3[%c1_41, %c0_42, %c0_43] : memref<4x16x64xf32, #tpu.memory_space<vmem>>, vector<1x16x64xf32>
    %35 = vector.shape_cast %34 : vector<1x16x64xf32> to vector<16x64xf32>
    %cst_44 = arith.constant dense<0.000000e+00> : vector<128x64xf32>
    %36 = tpu.matmul %33, %35, %cst_44 {dimension_numbers = #tpu.dot_dimension_numbers<[1], [0], [0], [1], [0, 0, 1, 1], [], []>} : vector<128x16xf32>, vector<16x64xf32>, vector<128x64xf32> -> vector<128x64xf32>
    %37 = arith.addf %31, %36 : vector<128x64xf32>
    %c0_45 = arith.constant 0 : index
    %c6 = arith.constant 6 : index
    %c0_46 = arith.constant 0 : index
    %c0_47 = arith.constant 0 : index
    %38 = vector.load %arg2[%c0_45, %c6, %c0_46, %c0_47] : memref<1x8x128x16xf32, #tpu.memory_space<vmem>>, vector<1x1x128x16xf32>
    %39 = vector.shape_cast %38 : vector<1x1x128x16xf32> to vector<128x16xf32>
    %c2_48 = arith.constant 2 : index
    %c0_49 = arith.constant 0 : index
    %c0_50 = arith.constant 0 : index
    %40 = vector.load %arg3[%c2_48, %c0_49, %c0_50] : memref<4x16x64xf32, #tpu.memory_space<vmem>>, vector<1x16x64xf32>
    %41 = vector.shape_cast %40 : vector<1x16x64xf32> to vector<16x64xf32>
    %cst_51 = arith.constant dense<0.000000e+00> : vector<128x64xf32>
    %42 = tpu.matmul %39, %41, %cst_51 {dimension_numbers = #tpu.dot_dimension_numbers<[1], [0], [0], [1], [0, 0, 1, 1], [], []>} : vector<128x16xf32>, vector<16x64xf32>, vector<128x64xf32> -> vector<128x64xf32>
    %43 = arith.addf %37, %42 : vector<128x64xf32>
    %c0_52 = arith.constant 0 : index
    %c7 = arith.constant 7 : index
    %c0_53 = arith.constant 0 : index
    %c0_54 = arith.constant 0 : index
    %44 = vector.load %arg2[%c0_52, %c7, %c0_53, %c0_54] : memref<1x8x128x16xf32, #tpu.memory_space<vmem>>, vector<1x1x128x16xf32>
    %45 = vector.shape_cast %44 : vector<1x1x128x16xf32> to vector<128x16xf32>
    %c3_55 = arith.constant 3 : index
    %c0_56 = arith.constant 0 : index
    %c0_57 = arith.constant 0 : index
    %46 = vector.load %arg3[%c3_55, %c0_56, %c0_57] : memref<4x16x64xf32, #tpu.memory_space<vmem>>, vector<1x16x64xf32>
    %47 = vector.shape_cast %46 : vector<1x16x64xf32> to vector<16x64xf32>
    %cst_58 = arith.constant dense<0.000000e+00> : vector<128x64xf32>
    %48 = tpu.matmul %45, %47, %cst_58 {dimension_numbers = #tpu.dot_dimension_numbers<[1], [0], [0], [1], [0, 0, 1, 1], [], []>} : vector<128x16xf32>, vector<16x64xf32>, vector<128x64xf32> -> vector<128x64xf32>
    %49 = arith.addf %43, %48 : vector<128x64xf32>
    %50 = vector.shape_cast %49 : vector<128x64xf32> to vector<8x16x64xf32>
    %c0_59 = arith.constant 0 : index
    %c0_60 = arith.constant 0 : index
    %c16 = arith.constant 16 : index
    %c0_61 = arith.constant 0 : index
    %51 = vector.load %arg4[%c0_59, %c0_60, %c16, %c0_61] : memref<1x8x32x64xf32, #tpu.memory_space<vmem>>, vector<1x8x16x64xf32>
    %52 = vector.shape_cast %51 : vector<1x8x16x64xf32> to vector<8x16x64xf32>
    %53 = vector.shape_cast %50 : vector<8x16x64xf32> to vector<1x8x16x64xf32>
    tpu.vector_store %arg4[%c0_59, %c0_60, %c16, %c0_61], %53 {strides = array<i32>} : memref<1x8x32x64xf32, #tpu.memory_space<vmem>>, vector<1x8x16x64xf32>,
    return
  }
  func.func @transform_0(%arg0: i32, %arg1: i32) -> (i32, i32, i32, i32) {
    %c0_i32 = arith.constant 0 : i32
    %c0_i32_0 = arith.constant 0 : i32
    %c0_i32_1 = arith.constant 0 : i32
    return %arg0, %c0_i32, %arg1, %c0_i32_0 : i32, i32, i32, i32
  }
  func.func @transform_1(%arg0: i32, %arg1: i32) -> (i32, i32, i32) {
    %c0_i32 = arith.constant 0 : i32
    %c0_i32_0 = arith.constant 0 : i32
    %c0_i32_1 = arith.constant 0 : i32
    %c0_i32_2 = arith.constant 0 : i32
    return %c0_i32, %c0_i32_0, %c0_i32_1 : i32, i32, i32
  }
  func.func @transform_2(%arg0: i32, %arg1: i32) -> (i32, i32, i32, i32) {
    %c0_i32 = arith.constant 0 : i32
    %c0_i32_0 = arith.constant 0 : i32
    %c0_i32_1 = arith.constant 0 : i32
    return %arg0, %arg1, %c0_i32, %c0_i32_0 : i32, i32, i32, i32
  }
}

</mosaic_0001>

<llo_original>
// kernel: tpu_custom_call.1
$region0: #{tpu_custom_call.1}
  #allocation0 [shape = 'u32[]', space=smem, size = 0x4, offset = 0x4, fixed_abs, tag = 'smem constant byte address 0x4 - core index']
  #allocation1 [shape = 'u32[144,128]{1,0:T(1,128)}', space=vmem, size = 0x12000, scoped, tag = 'internal scratch']
  %s0 = inlined_call_operand.vmem [shape: f32[4,8,128,16], index: 0, kind: input, shape index: {}]
  %s1 = inlined_call_operand.vmem [shape: f32[4,16,64], index: 1, kind: input, shape index: {}]
  %s2 = inlined_call_operand.hbm [shape: f32[4,8,32,64], index: 2, kind: output, shape index: {}]
  %s3 = sld [smem:[#allocation0]]
  $region41: #{tpu_custom_call.1} parent=0
    _
  %s5 = ssub.s32 1, %s3
  %s6 = scalar_select 0, %s5, %s3
  $region1: #{tpu_custom_call.1} parent=0
    #allocation2 [shape = 'u8[262144]{0}', space=vmem, size = 0x40000, scoped, tag = 'output window, operand 0']
    #allocation3 [shape = 's32[2]{0}', space=sflag, size = 0x8, scoped, tag = 'scoped memory for tpu_custom_call.1']
    %7 = vsyncpa [#allocation3], 0
    %s8 = scalar_lea.sflag [#allocation3], 1
    %9 = vsyncpa %s8, 0
    loop: start=0, step=1, limit=6
    $region2: #{tpu_custom_call.1} parent=1 // loop_pre_header
      _
    $region3: #{tpu_custom_call.1} parent=1 // loop_header
      %s11 = sphi 0, %s15
      %p12 = scmp.ge.s32.totalorder %s11, 6
      %s18 = sphi 0, %s30
      %s19 = sphi 0, %s26
      %s20 = sphi 0, %s18
      %s21 = sphi 0, %s19
      %s22 = sphi 0, %s20
      %s23 = sphi 0, %s21
      %s35 = sphi 0, %s37
      %s38 = sphi 0, %s35
      %s39 = sphi 0, %s38
      %s55 = sphi 0, %s39
      %s59 = sphi 0, %s59
      %s61 = sphi 0, %s59
      %s62 = sphi 0, %s61
      %s76 = sphi 0, %s62
      %s84 = sphi 0, %s86
      %s87 = sphi 0, %s84
      %s88 = sphi 0, %s87
      %s104 = sphi 0, %s88
    $region4: #{tpu_custom_call.1} parent=1 // loop_header_branch
      %14 = sbr.rel (%p12) target = $region8
    $region5: #{tpu_custom_call.1} parent=1 // loop_body
      %s16 = ssub.s32 %s11, 1
      %s17 = ssub.s32 %s11, 2
      %s24 = sadd.s32 1, %s19
      %p25 = scmp.ge.s32.totalorder %s24, 1
      %s26 = scalar_select %p25, 0, %s24
      %s27 = sadd.s32 1, %s18
      %s28 = scalar_select %p25, %s27, %s18
      %p29 = scmp.ge.s32.totalorder %s28, 4
      %s30 = scalar_select %p29, 0, %s28
      %s31 = ssub.s32 %s18, %s30
      %s32 = ssub.s32 %s19, %s26
      %s33 = sor.u32 %s31, %s32
      %p34 = scmp.eq.s32.totalorder %s33, 0
      %s36 = sadd.s32 %s35, 1
      %s37 = scalar_select %p34, %s35, %s36
      %p40 = pneg %p34
      %p41 = scmp.eq.s32.totalorder %s11, 3
      %p42 = por %p40, %p41
      %p43 = scmp.ne.s32.totalorder %s35, %s38
      %p44 = scmp.eq.s32.totalorder %s11, 0
      %p45 = por %p43, %p44
      %p46 = scmp.ne.s32.totalorder %s35, %s38
      %p47 = scmp.eq.s32.totalorder %s16, 3
      %p48 = por %p46, %p47
      %p49 = scmp.ne.s32.totalorder %s38, %s39
      %p50 = scmp.eq.s32.totalorder %s16, 0
      %p51 = por %p49, %p50
      %p52 = scmp.ne.s32.totalorder %s38, %s39
      %p53 = scmp.eq.s32.totalorder %s17, 3
      %p54 = por %p52, %p53
      %p56 = scmp.ne.s32.totalorder %s39, %s55
      %p57 = scmp.eq.s32.totalorder %s17, 0
      %p58 = por %p56, %p57
      %s60 = sadd.s32 %s59, 1
      %p63 = scmp.eq.s32.totalorder %s11, 3
      %p64 = scmp.ne.s32.totalorder %s59, %s61
      %p65 = scmp.eq.s32.totalorder %s11, 0
      %p66 = por %p64, %p65
      %p67 = scmp.ne.s32.totalorder %s59, %s61
      %p68 = scmp.eq.s32.totalorder %s16, 3
      %p69 = por %p67, %p68
      %p70 = scmp.ne.s32.totalorder %s61, %s62
      %p71 = scmp.eq.s32.totalorder %s16, 0
      %p72 = por %p70, %p71
      %p73 = scmp.ne.s32.totalorder %s61, %s62
      %p74 = scmp.eq.s32.totalorder %s17, 3
      %p75 = por %p73, %p74
      %p77 = scmp.ne.s32.totalorder %s62, %s76
      %p78 = scmp.eq.s32.totalorder %s17, 0
      %p79 = por %p77, %p78
      %s80 = ssub.s32 %s18, %s30
      %s81 = ssub.s32 %s19, %s26
      %s82 = sor.u32 %s80, %s81
      %p83 = scmp.eq.s32.totalorder %s82, 0
      %s85 = sadd.s32 %s84, 1
      %s86 = scalar_select %p83, %s84, %s85
      %p89 = pneg %p83
      %p90 = scmp.eq.s32.totalorder %s11, 3
      %p91 = por %p89, %p90
      %p92 = scmp.ne.s32.totalorder %s84, %s87
      %p93 = scmp.eq.s32.totalorder %s11, 0
      %p94 = por %p92, %p93
      %p95 = scmp.ne.s32.totalorder %s84, %s87
      %p96 = scmp.eq.s32.totalorder %s16, 3
      %p97 = por %p95, %p96
      %p98 = scmp.ne.s32.totalorder %s87, %s88
      %p99 = scmp.eq.s32.totalorder %s16, 0
      %p100 = por %p98, %p99
      %p101 = scmp.ne.s32.totalorder %s87, %s88
      %p102 = scmp.eq.s32.totalorder %s17, 3
      %p103 = por %p101, %p102
      %p105 = scmp.ne.s32.totalorder %s88, %s104
      %p106 = scmp.eq.s32.totalorder %s17, 0
      %p107 = por %p105, %p106
      %p108 = scmp.le.s32.totalorder 1, %s11
      %p109 = scmp.lt.s32.totalorder %s11, 5
      %p110 = pnand %p108, %p109
      %p111 = pneg %p110
      // Predicated region
      $region9: #{tpu_custom_call.1} parent=5 // pred_check
        _
      $region10: #{tpu_custom_call.1} parent=5 // pred_check_branch
        %113 = sbr.rel (%p110) target = $region12
      $region11: #{tpu_custom_call.1} parent=5 // pred_region
        %s114 = ssub.s32 %s11, 1
        // Predicated region
        $region13: #{tpu_custom_call.1} parent=11 // pred_check
          %p115 = pneg %p72
        $region14: #{tpu_custom_call.1} parent=11 // pred_check_branch
          %117 = sbr.rel (%p115) target = $region16
        $region15: #{tpu_custom_call.1} parent=11 // pred_region
          _
        $region16: #{tpu_custom_call.1} parent=11 // pred_fallthru
          _
      $region12: #{tpu_custom_call.1} parent=5 // pred_fallthru
        _
      %p118 = scmp.lt.s32.totalorder %s11, 4
      // Predicated region
      $region17: #{tpu_custom_call.1} parent=5 // pred_check
        %p119 = pneg %p118
      $region18: #{tpu_custom_call.1} parent=5 // pred_check_branch
        %121 = sbr.rel (%p119) target = $region20
      $region19: #{tpu_custom_call.1} parent=5 // pred_region
        // Predicated region
        $region21: #{tpu_custom_call.1} parent=19 // pred_check
          %p122 = pneg %p45
        $region22: #{tpu_custom_call.1} parent=19 // pred_check_branch
          %124 = sbr.rel (%p122) target = $region24
        $region23: #{tpu_custom_call.1} parent=19 // pred_region
          %s125 = smul.u32 16, %s19
          %p126 = scmp.lt.s32.totalorder %s18, 3
          %s127 = scalar_select %p126, %s18, 3
          %p128 = scmp.lt.s32.totalorder %s125, 15
          %s129 = scalar_select %p128, %s125, 15
          %s130 = smul.addr %s127, 128
          %s131 = sadd.s32 %s129, %s130
          %s132 = smul.addr %s131, 8
          %s133 = scalar_lea.vmem %s0, %s132
          %s134 = smul.u32 16, %s19
        $region24: #{tpu_custom_call.1} parent=19 // pred_fallthru
          _
      $region20: #{tpu_custom_call.1} parent=5 // pred_fallthru
        _
      %p135 = scmp.le.s32.totalorder 1, %s11
      %p136 = scmp.lt.s32.totalorder %s11, 5
      %p137 = pnand %p135, %p136
      %p138 = pneg %p137
      // Predicated region
      $region25: #{tpu_custom_call.1} parent=5 // pred_check
        _
      $region26: #{tpu_custom_call.1} parent=5 // pred_check_branch
        %140 = sbr.rel (%p137) target = $region28
      $region27: #{tpu_custom_call.1} parent=5 // pred_region
        %s141 = ssub.s32 %s11, 1
        %s142 = smul.u32 16, %s21
        %p143 = scmp.lt.s32.totalorder %s20, 3
        %s144 = scalar_select %p143, %s20, 3
        %p145 = scmp.lt.s32.totalorder %s142, 15
        %s146 = scalar_select %p145, %s142, 15
        %s147 = smul.addr %s144, 128
        %s148 = sadd.s32 %s146, %s147
        %s149 = smul.addr %s148, 8
        %s150 = scalar_lea.vmem %s0, %s149
        %p151 = pneg %p51
        %p152 = pneg %p48
        %p153 = pneg %p72
        %p154 = pneg %p69
        %p155 = pneg %p100
        %p156 = pneg %p97
        %s157 = sand.u32 %s87, 1
        %s158 = scalar_lea.sflag [#allocation3], %s157
        %s159 = sand.u32 %s87, 1
        %s160 = smul.addr %s159, 256
        %s161 = scalar_lea.vmem [#allocation2], %s160
        %s162 = smul.u32 16, %s21
        %p163 = scmp.lt.s32.totalorder %s20, 3
        %s164 = scalar_select %p163, %s20, 3
        %p165 = scmp.lt.s32.totalorder %s162, 15
        %s166 = scalar_select %p165, %s162, 15
        %s167 = smul.addr %s164, 128
        %s168 = sadd.s32 %s166, %s167
        %s169 = smul.addr %s168, 8
        %s170 = scalar_lea.vmem %s0, %s169
        %s171 = smul.u32 16, %s21
        %s172 = smul.u32 8, %s21
        %v173 = vld [vmem:[%s170] sm:$0xff]
        %v174 = vld [vmem:[%s170 + $0x8] sm:$0xff]
        %v175 = vld [vmem:[%s170 + $0x10] sm:$0xff]
        %v176 = vld [vmem:[%s170 + $0x18] sm:$0xff]
        %v177 = vld [vmem:[%s170 + $0x20] sm:$0xff]
        %v178 = vld [vmem:[%s170 + $0x28] sm:$0xff]
        %v179 = vld [vmem:[%s170 + $0x30] sm:$0xff]
        %v180 = vld [vmem:[%s170 + $0x38] sm:$0xff]
        %v181 = vld [vmem:[%s170 + $0x40] sm:$0xff]
        %v182 = vld [vmem:[%s170 + $0x48] sm:$0xff]
        %v183 = vld [vmem:[%s170 + $0x50] sm:$0xff]
        %v184 = vld [vmem:[%s170 + $0x58] sm:$0xff]
        %v185 = vld [vmem:[%s170 + $0x60] sm:$0xff]
        %v186 = vld [vmem:[%s170 + $0x68] sm:$0xff]
        %v187 = vld [vmem:[%s170 + $0x70] sm:$0xff]
        %v188 = vld [vmem:[%s170 + $0x78] sm:$0xff]
        %v189 = vld [vmem:[%s1] sm:$0xff]
        %v190 = vld [vmem:[%s1 + $0x8] sm:$0xff]
        %s191 = scalar_lea.vmem %s170, 128
        %v192 = vld [vmem:[%s191] sm:$0xff]
        %v193 = vld [vmem:[%s191 + $0x8] sm:$0xff]
        %v194 = vld [vmem:[%s191 + $0x10] sm:$0xff]
        %v195 = vld [vmem:[%s191 + $0x18] sm:$0xff]
        %v196 = vld [vmem:[%s191 + $0x20] sm:$0xff]
        %v197 = vld [vmem:[%s191 + $0x28] sm:$0xff]
        %v198 = vld [vmem:[%s191 + $0x30] sm:$0xff]
        %v199 = vld [vmem:[%s191 + $0x38] sm:$0xff]
        %v200 = vld [vmem:[%s191 + $0x40] sm:$0xff]
        %v201 = vld [vmem:[%s191 + $0x48] sm:$0xff]
        %v202 = vld [vmem:[%s191 + $0x50] sm:$0xff]
        %v203 = vld [vmem:[%s191 + $0x58] sm:$0xff]
        %v204 = vld [vmem:[%s191 + $0x60] sm:$0xff]
        %v205 = vld [vmem:[%s191 + $0x68] sm:$0xff]
        %v206 = vld [vmem:[%s191 + $0x70] sm:$0xff]
        %v207 = vld [vmem:[%s191 + $0x78] sm:$0xff]
        %s208 = scalar_lea.vmem %s1, 16
        %v209 = vld [vmem:[%s208] sm:$0xff]
        %v210 = vld [vmem:[%s208 + $0x8] sm:$0xff]
        %vm211 = vcmask 130048
        %v213 = vsel %vm211, %v192, 0
        %v216 = vsel %vm211, %v193, 0
        %v219 = vsel %vm211, %v194, 0
        %v222 = vsel %vm211, %v195, 0
        %v225 = vsel %vm211, %v196, 0
        %v228 = vsel %vm211, %v197, 0
        %v231 = vsel %vm211, %v198, 0
        %v234 = vsel %vm211, %v199, 0
        %v237 = vsel %vm211, %v200, 0
        %v240 = vsel %vm211, %v201, 0
        %v243 = vsel %vm211, %v202, 0
        %v246 = vsel %vm211, %v203, 0
        %v249 = vsel %vm211, %v204, 0
        %v252 = vsel %vm211, %v205, 0
        %v255 = vsel %vm211, %v206, 0
        %v258 = vsel %vm211, %v207, 0
        %260 = vmatprep.subr.mxu0 0.0
        %261 = vmatpush1.msra.mxu0 %v209
        %262 = vmatprep.subr.mxu0 0.0
        %263 = vmatpush1.msra.mxu0 %v210
        %264 = vmatprep.subr.mxu0 0.0
        %265 = vmatpush1.msra.mxu0 0.0
        %266 = vmatprep.subr.mxu0 0.0
        %267 = vmatpush1.msra.mxu0 0.0
        %268 = vmatprep.subr.mxu0 0.0
        %269 = vmatpush1.msra.mxu0 0.0
        %270 = vmatprep.subr.mxu0 0.0
        %271 = vmatpush1.msra.mxu0 0.0
        %272 = vmatprep.subr.mxu0 0.0
        %273 = vmatpush1.msra.mxu0 0.0
        %274 = vmatprep.subr.mxu0 0.0
        %275 = vmatpush1.msra.mxu0 0.0
        %276 = vmatprep.subr.mxu0 0.0
        %277 = vmatpush1.msra.mxu0 0.0
        %278 = vmatprep.subr.mxu0 0.0
        %279 = vmatpush1.msra.mxu0 0.0
        %280 = vmatprep.subr.mxu0 0.0
        %281 = vmatpush1.msra.mxu0 0.0
        %282 = vmatprep.subr.mxu0 0.0
        %283 = vmatpush1.msra.mxu0 0.0
        %284 = vmatprep.subr.mxu0 0.0
        %285 = vmatpush1.msra.mxu0 0.0
        %286 = vmatprep.subr.mxu0 0.0
        %287 = vmatpush1.msra.mxu0 0.0
        %288 = vmatprep.subr.mxu0 0.0
        %289 = vmatpush1.msra.mxu0 0.0
        %290 = vmatprep.subr.mxu0 0.0
        %291 = vmatpush1.msra.mxu0 0.0
        %292 = vmatprep.subr.mxu0 0.0
        %293 = vmatpush1.msra.mxu0 0.0
        %294 = vmatprep.subr.mxu0 0.0
        %295 = vmatpush1.msra.mxu0 0.0
        %296 = vmatprep.subr.mxu0 0.0
        %297 = vmatpush1.msra.mxu0 0.0
        %298 = vmatprep.subr.mxu0 0.0
        %299 = vmatpush1.msra.mxu0 0.0
        %300 = vmatprep.subr.mxu0 0.0
        %301 = vmatpush1.msra.mxu0 0.0
        %302 = vmatprep.subr.mxu0 0.0
        %303 = vmatpush1.msra.mxu0 0.0
        %304 = vmatprep.subr.mxu0 0.0
        %305 = vmatpush1.msra.mxu0 0.0
        %306 = vmatprep.subr.mxu0 0.0
        %307 = vmatpush1.msra.mxu0 0.0
        %308 = vmatprep.subr.mxu0 0.0
        %309 = vmatpush1.msra.mxu0 0.0
        %310 = vmatprep.subr.mxu0 0.0
        %311 = vmatpush1.msra.mxu0 0.0
        %312 = vmatprep.subr.mxu0 0.0
        %313 = vmatpush1.msra.mxu0 0.0
        %314 = vmatprep.subr.mxu0 0.0
        %315 = vmatpush1.msra.mxu0 0.0
        %316 = vmatprep.subr.mxu0 0.0
        %317 = vmatpush1.msra.mxu0 0.0
        %318 = vmatprep.subr.mxu0 0.0
        %319 = vmatpush1.msra.mxu0 0.0
        %320 = vmatprep.subr.mxu0 0.0
        %321 = vmatpush1.msra.mxu0 0.0
        %322 = vmatprep.subr.mxu0 0.0
        %323 = vmatpush1.msra.mxu0 0.0
        %324 = vmatprep.mubr.f32.mxu0 0.0
        %325 = vmatmul.mubr.f32.gmra.mrb[0].mxu0 %v213
        %v326 = vpop.f32.mrb[0].mxu0
        %v327 = vadd.f32 0.0, %v326
        %v328 = vpop.f32.mrb[0].mxu0
        %329 = vmatprep.mubr.f32.mxu0 0.0
        %330 = vmatmul.mubr.f32.gmra.mrb[0].mxu0 %v216
        %v331 = vpop.f32.mrb[0].mxu0
        %v332 = vadd.f32 0.0, %v331
        %v333 = vpop.f32.mrb[0].mxu0
        %334 = vmatprep.mubr.f32.mxu0 0.0
        %335 = vmatmul.mubr.f32.gmra.mrb[0].mxu0 %v219
        %v336 = vpop.f32.mrb[0].mxu0
        %v337 = vadd.f32 0.0, %v336
        %v338 = vpop.f32.mrb[0].mxu0
        %339 = vmatprep.mubr.f32.mxu0 0.0
        %340 = vmatmul.mubr.f32.gmra.mrb[0].mxu0 %v222
        %v341 = vpop.f32.mrb[0].mxu0
        %v342 = vadd.f32 0.0, %v341
        %v343 = vpop.f32.mrb[0].mxu0
        %344 = vmatprep.mubr.f32.mxu0 0.0
        %345 = vmatmul.mubr.f32.gmra.mrb[0].mxu0 %v225
        %v346 = vpop.f32.mrb[0].mxu0
        %v347 = vadd.f32 0.0, %v346
        %v348 = vpop.f32.mrb[0].mxu0
        %349 = vmatprep.mubr.f32.mxu0 0.0
        %350 = vmatmul.mubr.f32.gmra.mrb[0].mxu0 %v228
        %v351 = vpop.f32.mrb[0].mxu0
        %v352 = vadd.f32 0.0, %v351
        %v353 = vpop.f32.mrb[0].mxu0
        %354 = vmatprep.mubr.f32.mxu0 0.0
        %355 = vmatmul.mubr.f32.gmra.mrb[0].mxu0 %v231
        %v356 = vpop.f32.mrb[0].mxu0
        %v357 = vadd.f32 0.0, %v356
        %v358 = vpop.f32.mrb[0].mxu0
        %359 = vmatprep.mubr.f32.mxu0 0.0
        %360 = vmatmul.mubr.f32.gmra.mrb[0].mxu0 %v234
        %v361 = vpop.f32.mrb[0].mxu0
        %v362 = vadd.f32 0.0, %v361
        %v363 = vpop.f32.mrb[0].mxu0
        %364 = vmatprep.mubr.f32.mxu0 0.0
        %365 = vmatmul.mubr.f32.gmra.mrb[0].mxu0 %v237
        %v366 = vpop.f32.mrb[0].mxu0
        %v367 = vadd.f32 0.0, %v366
        %v368 = vpop.f32.mrb[0].mxu0
        %369 = vmatprep.mubr.f32.mxu0 0.0
        %370 = vmatmul.mubr.f32.gmra.mrb[0].mxu0 %v240
        %v371 = vpop.f32.mrb[0].mxu0
        %v372 = vadd.f32 0.0, %v371
        %v373 = vpop.f32.mrb[0].mxu0
        %374 = vmatprep.mubr.f32.mxu0 0.0
        %375 = vmatmul.mubr.f32.gmra.mrb[0].mxu0 %v243
        %v376 = vpop.f32.mrb[0].mxu0
        %v377 = vadd.f32 0.0, %v376
        %v378 = vpop.f32.mrb[0].mxu0
        %379 = vmatprep.mubr.f32.mxu0 0.0
        %380 = vmatmul.mubr.f32.gmra.mrb[0].mxu0 %v246
        %v381 = vpop.f32.mrb[0].mxu0
        %v382 = vadd.f32 0.0, %v381
        %v383 = vpop.f32.mrb[0].mxu0
        %384 = vmatprep.mubr.f32.mxu0 0.0
        %385 = vmatmul.mubr.f32.gmra.mrb[0].mxu0 %v249
        %v386 = vpop.f32.mrb[0].mxu0
        %v387 = vadd.f32 0.0, %v386
        %v388 = vpop.f32.mrb[0].mxu0
        %389 = vmatprep.mubr.f32.mxu0 0.0
        %390 = vmatmul.mubr.f32.gmra.mrb[0].mxu0 %v252
        %v391 = vpop.f32.mrb[0].mxu0
        %v392 = vadd.f32 0.0, %v391
        %v393 = vpop.f32.mrb[0].mxu0
        %394 = vmatprep.mubr.f32.mxu0 0.0
        %395 = vmatmul.mubr.f32.gmra.mrb[0].mxu0 %v255
        %v396 = vpop.f32.mrb[0].mxu0
        %v397 = vadd.f32 0.0, %v396
        %v398 = vpop.f32.mrb[0].mxu0
        %399 = vmatprep.mubr.f32.mxu0 0.0
        %400 = vmatmul.mubr.f32.gmra.mrb[0].mxu0 %v258
        %v401 = vpop.f32.mrb[0].mxu0
        %v402 = vadd.f32 0.0, %v401
        %v403 = vpop.f32.mrb[0].mxu0
        %404 = vdwg.mxu0
        %v406 = vsel %vm211, %v173, 0
        %v409 = vsel %vm211, %v174, 0
        %v412 = vsel %vm211, %v175, 0
        %v415 = vsel %vm211, %v176, 0
        %v418 = vsel %vm211, %v177, 0
        %v421 = vsel %vm211, %v178, 0
        %v424 = vsel %vm211, %v179, 0
        %v427 = vsel %vm211, %v180, 0
        %v430 = vsel %vm211, %v181, 0
        %v433 = vsel %vm211, %v182, 0
        %v436 = vsel %vm211, %v183, 0
        %v439 = vsel %vm211, %v184, 0
        %v442 = vsel %vm211, %v185, 0
        %v445 = vsel %vm211, %v186, 0
        %v448 = vsel %vm211, %v187, 0
        %v451 = vsel %vm211, %v188, 0
        %453 = vmatprep.subr.mxu0 0.0
        %454 = vmatpush1.msra.mxu0 %v189
        %455 = vmatprep.subr.mxu0 0.0
        %456 = vmatpush1.msra.mxu0 %v190
        %457 = vmatprep.subr.mxu0 0.0
        %458 = vmatpush1.msra.mxu0 0.0
        %459 = vmatprep.subr.mxu0 0.0
        %460 = vmatpush1.msra.mxu0 0.0
        %461 = vmatprep.subr.mxu0 0.0
        %462 = vmatpush1.msra.mxu0 0.0
        %463 = vmatprep.subr.mxu0 0.0
        %464 = vmatpush1.msra.mxu0 0.0
        %465 = vmatprep.subr.mxu0 0.0
        %466 = vmatpush1.msra.mxu0 0.0
        %467 = vmatprep.subr.mxu0 0.0
        %468 = vmatpush1.msra.mxu0 0.0
        %469 = vmatprep.subr.mxu0 0.0
        %470 = vmatpush1.msra.mxu0 0.0
        %471 = vmatprep.subr.mxu0 0.0
        %472 = vmatpush1.msra.mxu0 0.0
        %473 = vmatprep.subr.mxu0 0.0
        %474 = vmatpush1.msra.mxu0 0.0
        %475 = vmatprep.subr.mxu0 0.0
        %476 = vmatpush1.msra.mxu0 0.0
        %477 = vmatprep.subr.mxu0 0.0
        %478 = vmatpush1.msra.mxu0 0.0
        %479 = vmatprep.subr.mxu0 0.0
        %480 = vmatpush1.msra.mxu0 0.0
        %481 = vmatprep.subr.mxu0 0.0
        %482 = vmatpush1.msra.mxu0 0.0
        %483 = vmatprep.subr.mxu0 0.0
        %484 = vmatpush1.msra.mxu0 0.0
        %485 = vmatprep.subr.mxu0 0.0
        %486 = vmatpush1.msra.mxu0 0.0
        %487 = vmatprep.subr.mxu0 0.0
        %488 = vmatpush1.msra.mxu0 0.0
        %489 = vmatprep.subr.mxu0 0.0
        %490 = vmatpush1.msra.mxu0 0.0
        %491 = vmatprep.subr.mxu0 0.0
        %492 = vmatpush1.msra.mxu0 0.0
        %493 = vmatprep.subr.mxu0 0.0
        %494 = vmatpush1.msra.mxu0 0.0
        %495 = vmatprep.subr.mxu0 0.0
        %496 = vmatpush1.msra.mxu0 0.0
        %497 = vmatprep.subr.mxu0 0.0
        %498 = vmatpush1.msra.mxu0 0.0
        %499 = vmatprep.subr.mxu0 0.0
        %500 = vmatpush1.msra.mxu0 0.0
        %501 = vmatprep.subr.mxu0 0.0
        %502 = vmatpush1.msra.mxu0 0.0
        %503 = vmatprep.subr.mxu0 0.0
        %504 = vmatpush1.msra.mxu0 0.0
        %505 = vmatprep.subr.mxu0 0.0
        %506 = vmatpush1.msra.mxu0 0.0
        %507 = vmatprep.subr.mxu0 0.0
        %508 = vmatpush1.msra.mxu0 0.0
        %509 = vmatprep.subr.mxu0 0.0
        %510 = vmatpush1.msra.mxu0 0.0
        %511 = vmatprep.subr.mxu0 0.0
        %512 = vmatpush1.msra.mxu0 0.0
        %513 = vmatprep.subr.mxu0 0.0
        %514 = vmatpush1.msra.mxu0 0.0
        %515 = vmatprep.subr.mxu0 0.0
        %516 = vmatpush1.msra.mxu0 0.0
        %517 = vmatprep.mubr.f32.mxu0 0.0
        %518 = vmatmul.mubr.f32.gmra.mrb[0].mxu0 %v406
        %v519 = vpop.f32.mrb[0].mxu0
        %v520 = vadd.f32 %v327, %v519
        %v521 = vpop.f32.mrb[0].mxu0
        %522 = vmatprep.mubr.f32.mxu0 0.0
        %523 = vmatmul.mubr.f32.gmra.mrb[0].mxu0 %v409
        %v524 = vpop.f32.mrb[0].mxu0
        %v525 = vadd.f32 %v332, %v524
        %v526 = vpop.f32.mrb[0].mxu0
        %527 = vmatprep.mubr.f32.mxu0 0.0
        %528 = vmatmul.mubr.f32.gmra.mrb[0].mxu0 %v412
        %v529 = vpop.f32.mrb[0].mxu0
        %v530 = vadd.f32 %v337, %v529
        %v531 = vpop.f32.mrb[0].mxu0
        %532 = vmatprep.mubr.f32.mxu0 0.0
        %533 = vmatmul.mubr.f32.gmra.mrb[0].mxu0 %v415
        %v534 = vpop.f32.mrb[0].mxu0
        %v535 = vadd.f32 %v342, %v534
        %v536 = vpop.f32.mrb[0].mxu0
        %537 = vmatprep.mubr.f32.mxu0 0.0
        %538 = vmatmul.mubr.f32.gmra.mrb[0].mxu0 %v418
        %v539 = vpop.f32.mrb[0].mxu0
        %v540 = vadd.f32 %v347, %v539
        %v541 = vpop.f32.mrb[0].mxu0
        %542 = vmatprep.mubr.f32.mxu0 0.0
        %543 = vmatmul.mubr.f32.gmra.mrb[0].mxu0 %v421
        %v544 = vpop.f32.mrb[0].mxu0
        %v545 = vadd.f32 %v352, %v544
        %v546 = vpop.f32.mrb[0].mxu0
        %547 = vmatprep.mubr.f32.mxu0 0.0
        %548 = vmatmul.mubr.f32.gmra.mrb[0].mxu0 %v424
        %v549 = vpop.f32.mrb[0].mxu0
        %v550 = vadd.f32 %v357, %v549
        %v551 = vpop.f32.mrb[0].mxu0
        %552 = vmatprep.mubr.f32.mxu0 0.0
        %553 = vmatmul.mubr.f32.gmra.mrb[0].mxu0 %v427
        %v554 = vpop.f32.mrb[0].mxu0
        %v555 = vadd.f32 %v362, %v554
        %v556 = vpop.f32.mrb[0].mxu0
        %557 = vmatprep.mubr.f32.mxu0 0.0
        %558 = vmatmul.mubr.f32.gmra.mrb[0].mxu0 %v430
        %v559 = vpop.f32.mrb[0].mxu0
        %v560 = vadd.f32 %v367, %v559
        %v561 = vpop.f32.mrb[0].mxu0
        %562 = vmatprep.mubr.f32.mxu0 0.0
        %563 = vmatmul.mubr.f32.gmra.mrb[0].mxu0 %v433
        %v564 = vpop.f32.mrb[0].mxu0
        %v565 = vadd.f32 %v372, %v564
        %v566 = vpop.f32.mrb[0].mxu0
        %567 = vmatprep.mubr.f32.mxu0 0.0
        %568 = vmatmul.mubr.f32.gmra.mrb[0].mxu0 %v436
        %v569 = vpop.f32.mrb[0].mxu0
        %v570 = vadd.f32 %v377, %v569
        %v571 = vpop.f32.mrb[0].mxu0
        %572 = vmatprep.mubr.f32.mxu0 0.0
        %573 = vmatmul.mubr.f32.gmra.mrb[0].mxu0 %v439
        %v574 = vpop.f32.mrb[0].mxu0
        %v575 = vadd.f32 %v382, %v574
        %v576 = vpop.f32.mrb[0].mxu0
        %577 = vmatprep.mubr.f32.mxu0 0.0
        %578 = vmatmul.mubr.f32.gmra.mrb[0].mxu0 %v442
        %v579 = vpop.f32.mrb[0].mxu0
        %v580 = vadd.f32 %v387, %v579
        %v581 = vpop.f32.mrb[0].mxu0
        %582 = vmatprep.mubr.f32.mxu0 0.0
        %583 = vmatmul.mubr.f32.gmra.mrb[0].mxu0 %v445
        %v584 = vpop.f32.mrb[0].mxu0
        %v585 = vadd.f32 %v392, %v584
        %v586 = vpop.f32.mrb[0].mxu0
        %587 = vmatprep.mubr.f32.mxu0 0.0
        %588 = vmatmul.mubr.f32.gmra.mrb[0].mxu0 %v448
        %v589 = vpop.f32.mrb[0].mxu0
        %v590 = vadd.f32 %v397, %v589
        %v591 = vpop.f32.mrb[0].mxu0
        %592 = vmatprep.mubr.f32.mxu0 0.0
        %593 = vmatmul.mubr.f32.gmra.mrb[0].mxu0 %v451
        %v594 = vpop.f32.mrb[0].mxu0
        %v595 = vadd.f32 %v402, %v594
        %v596 = vpop.f32.mrb[0].mxu0
        %597 = vdwg.mxu0
        %s598 = scalar_lea.vmem %s170, 256
        %v599 = vld [vmem:[%s598] sm:$0xff]
        %v600 = vld [vmem:[%s598 + $0x8] sm:$0xff]
        %v601 = vld [vmem:[%s598 + $0x10] sm:$0xff]
        %v602 = vld [vmem:[%s598 + $0x18] sm:$0xff]
        %v603 = vld [vmem:[%s598 + $0x20] sm:$0xff]
        %v604 = vld [vmem:[%s598 + $0x28] sm:$0xff]
        %v605 = vld [vmem:[%s598 + $0x30] sm:$0xff]
        %v606 = vld [vmem:[%s598 + $0x38] sm:$0xff]
        %v607 = vld [vmem:[%s598 + $0x40] sm:$0xff]
        %v608 = vld [vmem:[%s598 + $0x48] sm:$0xff]
        %v609 = vld [vmem:[%s598 + $0x50] sm:$0xff]
        %v610 = vld [vmem:[%s598 + $0x58] sm:$0xff]
        %v611 = vld [vmem:[%s598 + $0x60] sm:$0xff]
        %v612 = vld [vmem:[%s598 + $0x68] sm:$0xff]
        %v613 = vld [vmem:[%s598 + $0x70] sm:$0xff]
        %v614 = vld [vmem:[%s598 + $0x78] sm:$0xff]
        %s615 = scalar_lea.vmem %s1, 32
        %v616 = vld [vmem:[%s615] sm:$0xff]
        %v617 = vld [vmem:[%s615 + $0x8] sm:$0xff]
        %v619 = vsel %vm211, %v599, 0
        %v622 = vsel %vm211, %v600, 0
        %v625 = vsel %vm211, %v601, 0
        %v628 = vsel %vm211, %v602, 0
        %v631 = vsel %vm211, %v603, 0
        %v634 = vsel %vm211, %v604, 0
        %v637 = vsel %vm211, %v605, 0
        %v640 = vsel %vm211, %v606, 0
        %v643 = vsel %vm211, %v607, 0
        %v646 = vsel %vm211, %v608, 0
        %v649 = vsel %vm211, %v609, 0
        %v652 = vsel %vm211, %v610, 0
        %v655 = vsel %vm211, %v611, 0
        %v658 = vsel %vm211, %v612, 0
        %v661 = vsel %vm211, %v613, 0
        %v664 = vsel %vm211, %v614, 0
        %666 = vmatprep.subr.mxu0 0.0
        %667 = vmatpush1.msra.mxu0 %v616
        %668 = vmatprep.subr.mxu0 0.0
        %669 = vmatpush1.msra.mxu0 %v617
        %670 = vmatprep.subr.mxu0 0.0
        %671 = vmatpush1.msra.mxu0 0.0
        %672 = vmatprep.subr.mxu0 0.0
        %673 = vmatpush1.msra.mxu0 0.0
        %674 = vmatprep.subr.mxu0 0.0
        %675 = vmatpush1.msra.mxu0 0.0
        %676 = vmatprep.subr.mxu0 0.0
        %677 = vmatpush1.msra.mxu0 0.0
        %678 = vmatprep.subr.mxu0 0.0
        %679 = vmatpush1.msra.mxu0 0.0
        %680 = vmatprep.subr.mxu0 0.0
        %681 = vmatpush1.msra.mxu0 0.0
        %682 = vmatprep.subr.mxu0 0.0
        %683 = vmatpush1.msra.mxu0 0.0
        %684 = vmatprep.subr.mxu0 0.0
        %685 = vmatpush1.msra.mxu0 0.0
        %686 = vmatprep.subr.mxu0 0.0
        %687 = vmatpush1.msra.mxu0 0.0
        %688 = vmatprep.subr.mxu0 0.0
        %689 = vmatpush1.msra.mxu0 0.0
        %690 = vmatprep.subr.mxu0 0.0
        %691 = vmatpush1.msra.mxu0 0.0
        %692 = vmatprep.subr.mxu0 0.0
        %693 = vmatpush1.msra.mxu0 0.0
        %694 = vmatprep.subr.mxu0 0.0
        %695 = vmatpush1.msra.mxu0 0.0
        %696 = vmatprep.subr.mxu0 0.0
        %697 = vmatpush1.msra.mxu0 0.0
        %698 = vmatprep.subr.mxu0 0.0
        %699 = vmatpush1.msra.mxu0 0.0
        %700 = vmatprep.subr.mxu0 0.0
        %701 = vmatpush1.msra.mxu0 0.0
        %702 = vmatprep.subr.mxu0 0.0
        %703 = vmatpush1.msra.mxu0 0.0
        %704 = vmatprep.subr.mxu0 0.0
        %705 = vmatpush1.msra.mxu0 0.0
        %706 = vmatprep.subr.mxu0 0.0
        %707 = vmatpush1.msra.mxu0 0.0
        %708 = vmatprep.subr.mxu0 0.0
        %709 = vmatpush1.msra.mxu0 0.0
        %710 = vmatprep.subr.mxu0 0.0
        %711 = vmatpush1.msra.mxu0 0.0
        %712 = vmatprep.subr.mxu0 0.0
        %713 = vmatpush1.msra.mxu0 0.0
        %714 = vmatprep.subr.mxu0 0.0
        %715 = vmatpush1.msra.mxu0 0.0
        %716 = vmatprep.subr.mxu0 0.0
        %717 = vmatpush1.msra.mxu0 0.0
        %718 = vmatprep.subr.mxu0 0.0
        %719 = vmatpush1.msra.mxu0 0.0
        %720 = vmatprep.subr.mxu0 0.0
        %721 = vmatpush1.msra.mxu0 0.0
        %722 = vmatprep.subr.mxu0 0.0
        %723 = vmatpush1.msra.mxu0 0.0
        %724 = vmatprep.subr.mxu0 0.0
        %725 = vmatpush1.msra.mxu0 0.0
        %726 = vmatprep.subr.mxu0 0.0
        %727 = vmatpush1.msra.mxu0 0.0
        %728 = vmatprep.subr.mxu0 0.0
        %729 = vmatpush1.msra.mxu0 0.0
        %730 = vmatprep.mubr.f32.mxu0 0.0
        %731 = vmatmul.mubr.f32.gmra.mrb[0].mxu0 %v619
        %v732 = vpop.f32.mrb[0].mxu0
        %v733 = vadd.f32 0.0, %v732
        %v734 = vpop.f32.mrb[0].mxu0
        %735 = vmatprep.mubr.f32.mxu0 0.0
        %736 = vmatmul.mubr.f32.gmra.mrb[0].mxu0 %v622
        %v737 = vpop.f32.mrb[0].mxu0
        %v738 = vadd.f32 0.0, %v737
        %v739 = vpop.f32.mrb[0].mxu0
        %740 = vmatprep.mubr.f32.mxu0 0.0
        %741 = vmatmul.mubr.f32.gmra.mrb[0].mxu0 %v625
        %v742 = vpop.f32.mrb[0].mxu0
        %v743 = vadd.f32 0.0, %v742
        %v744 = vpop.f32.mrb[0].mxu0
        %745 = vmatprep.mubr.f32.mxu0 0.0
        %746 = vmatmul.mubr.f32.gmra.mrb[0].mxu0 %v628
        %v747 = vpop.f32.mrb[0].mxu0
        %v748 = vadd.f32 0.0, %v747
        %v749 = vpop.f32.mrb[0].mxu0
        %750 = vmatprep.mubr.f32.mxu0 0.0
        %751 = vmatmul.mubr.f32.gmra.mrb[0].mxu0 %v631
        %v752 = vpop.f32.mrb[0].mxu0
        %v753 = vadd.f32 0.0, %v752
        %v754 = vpop.f32.mrb[0].mxu0
        %755 = vmatprep.mubr.f32.mxu0 0.0
        %756 = vmatmul.mubr.f32.gmra.mrb[0].mxu0 %v634
        %v757 = vpop.f32.mrb[0].mxu0
        %v758 = vadd.f32 0.0, %v757
        %v759 = vpop.f32.mrb[0].mxu0
        %760 = vmatprep.mubr.f32.mxu0 0.0
        %761 = vmatmul.mubr.f32.gmra.mrb[0].mxu0 %v637
        %v762 = vpop.f32.mrb[0].mxu0
        %v763 = vadd.f32 0.0, %v762
        %v764 = vpop.f32.mrb[0].mxu0
        %765 = vmatprep.mubr.f32.mxu0 0.0
        %766 = vmatmul.mubr.f32.gmra.mrb[0].mxu0 %v640
        %v767 = vpop.f32.mrb[0].mxu0
        %v768 = vadd.f32 0.0, %v767
        %v769 = vpop.f32.mrb[0].mxu0
        %770 = vmatprep.mubr.f32.mxu0 0.0
        %771 = vmatmul.mubr.f32.gmra.mrb[0].mxu0 %v643
        %v772 = vpop.f32.mrb[0].mxu0
        %v773 = vadd.f32 0.0, %v772
        %v774 = vpop.f32.mrb[0].mxu0
        %775 = vmatprep.mubr.f32.mxu0 0.0
        %776 = vmatmul.mubr.f32.gmra.mrb[0].mxu0 %v646
        %v777 = vpop.f32.mrb[0].mxu0
        %v778 = vadd.f32 0.0, %v777
        %v779 = vpop.f32.mrb[0].mxu0
        %780 = vmatprep.mubr.f32.mxu0 0.0
        %781 = vmatmul.mubr.f32.gmra.mrb[0].mxu0 %v649
        %v782 = vpop.f32.mrb[0].mxu0
        %v783 = vadd.f32 0.0, %v782
        %v784 = vpop.f32.mrb[0].mxu0
        %785 = vmatprep.mubr.f32.mxu0 0.0
        %786 = vmatmul.mubr.f32.gmra.mrb[0].mxu0 %v652
        %v787 = vpop.f32.mrb[0].mxu0
        %v788 = vadd.f32 0.0, %v787
        %v789 = vpop.f32.mrb[0].mxu0
        %790 = vmatprep.mubr.f32.mxu0 0.0
        %791 = vmatmul.mubr.f32.gmra.mrb[0].mxu0 %v655
        %v792 = vpop.f32.mrb[0].mxu0
        %v793 = vadd.f32 0.0, %v792
        %v794 = vpop.f32.mrb[0].mxu0
        %795 = vmatprep.mubr.f32.mxu0 0.0
        %796 = vmatmul.mubr.f32.gmra.mrb[0].mxu0 %v658
        %v797 = vpop.f32.mrb[0].mxu0
        %v798 = vadd.f32 0.0, %v797
        %v799 = vpop.f32.mrb[0].mxu0
        %800 = vmatprep.mubr.f32.mxu0 0.0
        %801 = vmatmul.mubr.f32.gmra.mrb[0].mxu0 %v661
        %v802 = vpop.f32.mrb[0].mxu0
        %v803 = vadd.f32 0.0, %v802
        %v804 = vpop.f32.mrb[0].mxu0
        %805 = vmatprep.mubr.f32.mxu0 0.0
        %806 = vmatmul.mubr.f32.gmra.mrb[0].mxu0 %v664
        %v807 = vpop.f32.mrb[0].mxu0
        %v808 = vadd.f32 0.0, %v807
        %v809 = vpop.f32.mrb[0].mxu0
        %810 = vdwg.mxu0
        %v811 = vadd.f32 %v520, %v733
        %v812 = vadd.f32 %v525, %v738
        %v813 = vadd.f32 %v530, %v743
        %v814 = vadd.f32 %v535, %v748
        %v815 = vadd.f32 %v540, %v753
        %v816 = vadd.f32 %v545, %v758
        %v817 = vadd.f32 %v550, %v763
        %v818 = vadd.f32 %v555, %v768
        %v819 = vadd.f32 %v560, %v773
        %v820 = vadd.f32 %v565, %v778
        %v821 = vadd.f32 %v570, %v783
        %v822 = vadd.f32 %v575, %v788
        %v823 = vadd.f32 %v580, %v793
        %v824 = vadd.f32 %v585, %v798
        %v825 = vadd.f32 %v590, %v803
        %v826 = vadd.f32 %v595, %v808
        %s827 = scalar_lea.vmem %s170, 384
        %v828 = vld [vmem:[%s827] sm:$0xff]
        %v829 = vld [vmem:[%s827 + $0x8] sm:$0xff]
        %v830 = vld [vmem:[%s827 + $0x10] sm:$0xff]
        %v831 = vld [vmem:[%s827 + $0x18] sm:$0xff]
        %v832 = vld [vmem:[%s827 + $0x20] sm:$0xff]
        %v833 = vld [vmem:[%s827 + $0x28] sm:$0xff]
        %v834 = vld [vmem:[%s827 + $0x30] sm:$0xff]
        %v835 = vld [vmem:[%s827 + $0x38] sm:$0xff]
        %v836 = vld [vmem:[%s827 + $0x40] sm:$0xff]
        %v837 = vld [vmem:[%s827 + $0x48] sm:$0xff]
        %v838 = vld [vmem:[%s827 + $0x50] sm:$0xff]
        %v839 = vld [vmem:[%s827 + $0x58] sm:$0xff]
        %v840 = vld [vmem:[%s827 + $0x60] sm:$0xff]
        %v841 = vld [vmem:[%s827 + $0x68] sm:$0xff]
        %v842 = vld [vmem:[%s827 + $0x70] sm:$0xff]
        %v843 = vld [vmem:[%s827 + $0x78] sm:$0xff]
        %s844 = scalar_lea.vmem %s1, 48
        %v845 = vld [vmem:[%s844] sm:$0xff]
        %v846 = vld [vmem:[%s844 + $0x8] sm:$0xff]
        %v848 = vsel %vm211, %v828, 0
        %v851 = vsel %vm211, %v829, 0
        %v854 = vsel %vm211, %v830, 0
        %v857 = vsel %vm211, %v831, 0
        %v860 = vsel %vm211, %v832, 0
        %v863 = vsel %vm211, %v833, 0
        %v866 = vsel %vm211, %v834, 0
        %v869 = vsel %vm211, %v835, 0
        %v872 = vsel %vm211, %v836, 0
        %v875 = vsel %vm211, %v837, 0
        %v878 = vsel %vm211, %v838, 0
        %v881 = vsel %vm211, %v839, 0
        %v884 = vsel %vm211, %v840, 0
        %v887 = vsel %vm211, %v841, 0
        %v890 = vsel %vm211, %v842, 0
        %v893 = vsel %vm211, %v843, 0
        %895 = vmatprep.subr.mxu0 0.0
        %896 = vmatpush1.msra.mxu0 %v845
        %897 = vmatprep.subr.mxu0 0.0
        %898 = vmatpush1.msra.mxu0 %v846
        %899 = vmatprep.subr.mxu0 0.0
        %900 = vmatpush1.msra.mxu0 0.0
        %901 = vmatprep.subr.mxu0 0.0
        %902 = vmatpush1.msra.mxu0 0.0
        %903 = vmatprep.subr.mxu0 0.0
        %904 = vmatpush1.msra.mxu0 0.0
        %905 = vmatprep.subr.mxu0 0.0
        %906 = vmatpush1.msra.mxu0 0.0
        %907 = vmatprep.subr.mxu0 0.0
        %908 = vmatpush1.msra.mxu0 0.0
        %909 = vmatprep.subr.mxu0 0.0
        %910 = vmatpush1.msra.mxu0 0.0
        %911 = vmatprep.subr.mxu0 0.0
        %912 = vmatpush1.msra.mxu0 0.0
        %913 = vmatprep.subr.mxu0 0.0
        %914 = vmatpush1.msra.mxu0 0.0
        %915 = vmatprep.subr.mxu0 0.0
        %916 = vmatpush1.msra.mxu0 0.0
        %917 = vmatprep.subr.mxu0 0.0
        %918 = vmatpush1.msra.mxu0 0.0
        %919 = vmatprep.subr.mxu0 0.0
        %920 = vmatpush1.msra.mxu0 0.0
        %921 = vmatprep.subr.mxu0 0.0
        %922 = vmatpush1.msra.mxu0 0.0
        %923 = vmatprep.subr.mxu0 0.0
        %924 = vmatpush1.msra.mxu0 0.0
        %925 = vmatprep.subr.mxu0 0.0
        %926 = vmatpush1.msra.mxu0 0.0
        %927 = vmatprep.subr.mxu0 0.0
        %928 = vmatpush1.msra.mxu0 0.0
        %929 = vmatprep.subr.mxu0 0.0
        %930 = vmatpush1.msra.mxu0 0.0
        %931 = vmatprep.subr.mxu0 0.0
        %932 = vmatpush1.msra.mxu0 0.0
        %933 = vmatprep.subr.mxu0 0.0
        %934 = vmatpush1.msra.mxu0 0.0
        %935 = vmatprep.subr.mxu0 0.0
        %936 = vmatpush1.msra.mxu0 0.0
        %937 = vmatprep.subr.mxu0 0.0
        %938 = vmatpush1.msra.mxu0 0.0
        %939 = vmatprep.subr.mxu0 0.0
        %940 = vmatpush1.msra.mxu0 0.0
        %941 = vmatprep.subr.mxu0 0.0
        %942 = vmatpush1.msra.mxu0 0.0
        %943 = vmatprep.subr.mxu0 0.0
        %944 = vmatpush1.msra.mxu0 0.0
        %945 = vmatprep.subr.mxu0 0.0
        %946 = vmatpush1.msra.mxu0 0.0
        %947 = vmatprep.subr.mxu0 0.0
        %948 = vmatpush1.msra.mxu0 0.0
        %949 = vmatprep.subr.mxu0 0.0
        %950 = vmatpush1.msra.mxu0 0.0
        %951 = vmatprep.subr.mxu0 0.0
        %952 = vmatpush1.msra.mxu0 0.0
        %953 = vmatprep.subr.mxu0 0.0
        %954 = vmatpush1.msra.mxu0 0.0
        %955 = vmatprep.subr.mxu0 0.0
        %956 = vmatpush1.msra.mxu0 0.0
        %957 = vmatprep.subr.mxu0 0.0
        %958 = vmatpush1.msra.mxu0 0.0
        %959 = vmatprep.mubr.f32.mxu0 0.0
        %960 = vmatmul.mubr.f32.gmra.mrb[0].mxu0 %v848
        %v961 = vpop.f32.mrb[0].mxu0
        %v962 = vadd.f32 0.0, %v961
        %v963 = vpop.f32.mrb[0].mxu0
        %964 = vmatprep.mubr.f32.mxu0 0.0
        %965 = vmatmul.mubr.f32.gmra.mrb[0].mxu0 %v851
        %v966 = vpop.f32.mrb[0].mxu0
        %v967 = vadd.f32 0.0, %v966
        %v968 = vpop.f32.mrb[0].mxu0
        %969 = vmatprep.mubr.f32.mxu0 0.0
        %970 = vmatmul.mubr.f32.gmra.mrb[0].mxu0 %v854
        %v971 = vpop.f32.mrb[0].mxu0
        %v972 = vadd.f32 0.0, %v971
        %v973 = vpop.f32.mrb[0].mxu0
        %974 = vmatprep.mubr.f32.mxu0 0.0
        %975 = vmatmul.mubr.f32.gmra.mrb[0].mxu0 %v857
        %v976 = vpop.f32.mrb[0].mxu0
        %v977 = vadd.f32 0.0, %v976
        %v978 = vpop.f32.mrb[0].mxu0
        %979 = vmatprep.mubr.f32.mxu0 0.0
        %980 = vmatmul.mubr.f32.gmra.mrb[0].mxu0 %v860
        %v981 = vpop.f32.mrb[0].mxu0
        %v982 = vadd.f32 0.0, %v981
        %v983 = vpop.f32.mrb[0].mxu0
        %984 = vmatprep.mubr.f32.mxu0 0.0
        %985 = vmatmul.mubr.f32.gmra.mrb[0].mxu0 %v863
        %v986 = vpop.f32.mrb[0].mxu0
        %v987 = vadd.f32 0.0, %v986
        %v988 = vpop.f32.mrb[0].mxu0
        %989 = vmatprep.mubr.f32.mxu0 0.0
        %990 = vmatmul.mubr.f32.gmra.mrb[0].mxu0 %v866
        %v991 = vpop.f32.mrb[0].mxu0
        %v992 = vadd.f32 0.0, %v991
        %v993 = vpop.f32.mrb[0].mxu0
        %994 = vmatprep.mubr.f32.mxu0 0.0
        %995 = vmatmul.mubr.f32.gmra.mrb[0].mxu0 %v869
        %v996 = vpop.f32.mrb[0].mxu0
        %v997 = vadd.f32 0.0, %v996
        %v998 = vpop.f32.mrb[0].mxu0
        %999 = vmatprep.mubr.f32.mxu0 0.0
        %1000 = vmatmul.mubr.f32.gmra.mrb[0].mxu0 %v872
        %v1001 = vpop.f32.mrb[0].mxu0
        %v1002 = vadd.f32 0.0, %v1001
        %v1003 = vpop.f32.mrb[0].mxu0
        %1004 = vmatprep.mubr.f32.mxu0 0.0
        %1005 = vmatmul.mubr.f32.gmra.mrb[0].mxu0 %v875
        %v1006 = vpop.f32.mrb[0].mxu0
        %v1007 = vadd.f32 0.0, %v1006
        %v1008 = vpop.f32.mrb[0].mxu0
        %1009 = vmatprep.mubr.f32.mxu0 0.0
        %1010 = vmatmul.mubr.f32.gmra.mrb[0].mxu0 %v878
        %v1011 = vpop.f32.mrb[0].mxu0
        %v1012 = vadd.f32 0.0, %v1011
        %v1013 = vpop.f32.mrb[0].mxu0
        %1014 = vmatprep.mubr.f32.mxu0 0.0
        %1015 = vmatmul.mubr.f32.gmra.mrb[0].mxu0 %v881
        %v1016 = vpop.f32.mrb[0].mxu0
        %v1017 = vadd.f32 0.0, %v1016
        %v1018 = vpop.f32.mrb[0].mxu0
        %1019 = vmatprep.mubr.f32.mxu0 0.0
        %1020 = vmatmul.mubr.f32.gmra.mrb[0].mxu0 %v884
        %v1021 = vpop.f32.mrb[0].mxu0
        %v1022 = vadd.f32 0.0, %v1021
        %v1023 = vpop.f32.mrb[0].mxu0
        %1024 = vmatprep.mubr.f32.mxu0 0.0
        %1025 = vmatmul.mubr.f32.gmra.mrb[0].mxu0 %v887
        %v1026 = vpop.f32.mrb[0].mxu0
        %v1027 = vadd.f32 0.0, %v1026
        %v1028 = vpop.f32.mrb[0].mxu0
        %1029 = vmatprep.mubr.f32.mxu0 0.0
        %1030 = vmatmul.mubr.f32.gmra.mrb[0].mxu0 %v890
        %v1031 = vpop.f32.mrb[0].mxu0
        %v1032 = vadd.f32 0.0, %v1031
        %v1033 = vpop.f32.mrb[0].mxu0
        %1034 = vmatprep.mubr.f32.mxu0 0.0
        %1035 = vmatmul.mubr.f32.gmra.mrb[0].mxu0 %v893
        %v1036 = vpop.f32.mrb[0].mxu0
        %v1037 = vadd.f32 0.0, %v1036
        %v1038 = vpop.f32.mrb[0].mxu0
        %1039 = vdwg.mxu0
        %v1040 = vadd.f32 %v811, %v962
        %v1041 = vadd.f32 %v812, %v967
        %v1042 = vadd.f32 %v813, %v972
        %v1043 = vadd.f32 %v814, %v977
        %v1044 = vadd.f32 %v815, %v982
        %v1045 = vadd.f32 %v816, %v987
        %v1046 = vadd.f32 %v817, %v992
        %v1047 = vadd.f32 %v818, %v997
        %v1048 = vadd.f32 %v819, %v1002
        %v1049 = vadd.f32 %v820, %v1007
        %v1050 = vadd.f32 %v821, %v1012
        %v1051 = vadd.f32 %v822, %v1017
        %v1052 = vadd.f32 %v823, %v1022
        %v1053 = vadd.f32 %v824, %v1027
        %v1054 = vadd.f32 %v825, %v1032
        %v1055 = vadd.f32 %v826, %v1037
        %vm1056 = vcmask 523264
        %1057 = vst.msk [vmem:[%s161] sm:$0xff] %vm1056, %v1040
        %1058 = vst.msk [vmem:[%s161 + $0x8] sm:$0xff] %vm1056, %v1041
        %1059 = vst.msk [vmem:[%s161 + $0x20] sm:$0xff] %vm1056, %v1042
        %1060 = vst.msk [vmem:[%s161 + $0x28] sm:$0xff] %vm1056, %v1043
        %1061 = vst.msk [vmem:[%s161 + $0x40] sm:$0xff] %vm1056, %v1044
        %1062 = vst.msk [vmem:[%s161 + $0x48] sm:$0xff] %vm1056, %v1045
        %1063 = vst.msk [vmem:[%s161 + $0x60] sm:$0xff] %vm1056, %v1046
        %1064 = vst.msk [vmem:[%s161 + $0x68] sm:$0xff] %vm1056, %v1047
        %1065 = vst.msk [vmem:[%s161 + $0x80] sm:$0xff] %vm1056, %v1048
        %1066 = vst.msk [vmem:[%s161 + $0x88] sm:$0xff] %vm1056, %v1049
        %1067 = vst.msk [vmem:[%s161 + $0xa0] sm:$0xff] %vm1056, %v1050
        %1068 = vst.msk [vmem:[%s161 + $0xa8] sm:$0xff] %vm1056, %v1051
        %1069 = vst.msk [vmem:[%s161 + $0xc0] sm:$0xff] %vm1056, %v1052
        %1070 = vst.msk [vmem:[%s161 + $0xc8] sm:$0xff] %vm1056, %v1053
        %1071 = vst.msk [vmem:[%s161 + $0xe0] sm:$0xff] %vm1056, %v1054
        %1072 = vst.msk [vmem:[%s161 + $0xe8] sm:$0xff] %vm1056, %v1055
        %s1073 = scalar_lea.vmem %s170, 512
        %v1074 = vld [vmem:[%s1073] sm:$0xff]
        %v1075 = vld [vmem:[%s1073 + $0x8] sm:$0xff]
        %v1076 = vld [vmem:[%s1073 + $0x10] sm:$0xff]
        %v1077 = vld [vmem:[%s1073 + $0x18] sm:$0xff]
        %v1078 = vld [vmem:[%s1073 + $0x20] sm:$0xff]
        %v1079 = vld [vmem:[%s1073 + $0x28] sm:$0xff]
        %v1080 = vld [vmem:[%s1073 + $0x30] sm:$0xff]
        %v1081 = vld [vmem:[%s1073 + $0x38] sm:$0xff]
        %v1082 = vld [vmem:[%s1073 + $0x40] sm:$0xff]
        %v1083 = vld [vmem:[%s1073 + $0x48] sm:$0xff]
        %v1084 = vld [vmem:[%s1073 + $0x50] sm:$0xff]
        %v1085 = vld [vmem:[%s1073 + $0x58] sm:$0xff]
        %v1086 = vld [vmem:[%s1073 + $0x60] sm:$0xff]
        %v1087 = vld [vmem:[%s1073 + $0x68] sm:$0xff]
        %v1088 = vld [vmem:[%s1073 + $0x70] sm:$0xff]
        %v1089 = vld [vmem:[%s1073 + $0x78] sm:$0xff]
        %v1090 = vld [vmem:[%s1] sm:$0xff]
        %v1091 = vld [vmem:[%s1 + $0x8] sm:$0xff]
        %s1092 = scalar_lea.vmem %s170, 640
        %v1093 = vld [vmem:[%s1092] sm:$0xff]
        %v1094 = vld [vmem:[%s1092 + $0x8] sm:$0xff]
        %v1095 = vld [vmem:[%s1092 + $0x10] sm:$0xff]
        %v1096 = vld [vmem:[%s1092 + $0x18] sm:$0xff]
        %v1097 = vld [vmem:[%s1092 + $0x20] sm:$0xff]
        %v1098 = vld [vmem:[%s1092 + $0x28] sm:$0xff]
        %v1099 = vld [vmem:[%s1092 + $0x30] sm:$0xff]
        %v1100 = vld [vmem:[%s1092 + $0x38] sm:$0xff]
        %v1101 = vld [vmem:[%s1092 + $0x40] sm:$0xff]
        %v1102 = vld [vmem:[%s1092 + $0x48] sm:$0xff]
        %v1103 = vld [vmem:[%s1092 + $0x50] sm:$0xff]
        %v1104 = vld [vmem:[%s1092 + $0x58] sm:$0xff]
        %v1105 = vld [vmem:[%s1092 + $0x60] sm:$0xff]
        %v1106 = vld [vmem:[%s1092 + $0x68] sm:$0xff]
        %v1107 = vld [vmem:[%s1092 + $0x70] sm:$0xff]
        %v1108 = vld [vmem:[%s1092 + $0x78] sm:$0xff]
        %v1109 = vld [vmem:[%s208] sm:$0xff]
        %v1110 = vld [vmem:[%s208 + $0x8] sm:$0xff]
        %v1112 = vsel %vm211, %v1093, 0
        %v1115 = vsel %vm211, %v1094, 0
        %v1118 = vsel %vm211, %v1095, 0
        %v1121 = vsel %vm211, %v1096, 0
        %v1124 = vsel %vm211, %v1097, 0
        %v1127 = vsel %vm211, %v1098, 0
        %v1130 = vsel %vm211, %v1099, 0
        %v1133 = vsel %vm211, %v1100, 0
        %v1136 = vsel %vm211, %v1101, 0
        %v1139 = vsel %vm211, %v1102, 0
        %v1142 = vsel %vm211, %v1103, 0
        %v1145 = vsel %vm211, %v1104, 0
        %v1148 = vsel %vm211, %v1105, 0
        %v1151 = vsel %vm211, %v1106, 0
        %v1154 = vsel %vm211, %v1107, 0
        %v1157 = vsel %vm211, %v1108, 0
        %1159 = vmatprep.subr.mxu0 0.0
        %1160 = vmatpush1.msra.mxu0 %v1109
        %1161 = vmatprep.subr.mxu0 0.0
        %1162 = vmatpush1.msra.mxu0 %v1110
        %1163 = vmatprep.subr.mxu0 0.0
        %1164 = vmatpush1.msra.mxu0 0.0
        %1165 = vmatprep.subr.mxu0 0.0
        %1166 = vmatpush1.msra.mxu0 0.0
        %1167 = vmatprep.subr.mxu0 0.0
        %1168 = vmatpush1.msra.mxu0 0.0
        %1169 = vmatprep.subr.mxu0 0.0
        %1170 = vmatpush1.msra.mxu0 0.0
        %1171 = vmatprep.subr.mxu0 0.0
        %1172 = vmatpush1.msra.mxu0 0.0
        %1173 = vmatprep.subr.mxu0 0.0
        %1174 = vmatpush1.msra.mxu0 0.0
        %1175 = vmatprep.subr.mxu0 0.0
        %1176 = vmatpush1.msra.mxu0 0.0
        %1177 = vmatprep.subr.mxu0 0.0
        %1178 = vmatpush1.msra.mxu0 0.0
        %1179 = vmatprep.subr.mxu0 0.0
        %1180 = vmatpush1.msra.mxu0 0.0
        %1181 = vmatprep.subr.mxu0 0.0
        %1182 = vmatpush1.msra.mxu0 0.0
        %1183 = vmatprep.subr.mxu0 0.0
        %1184 = vmatpush1.msra.mxu0 0.0
        %1185 = vmatprep.subr.mxu0 0.0
        %1186 = vmatpush1.msra.mxu0 0.0
        %1187 = vmatprep.subr.mxu0 0.0
        %1188 = vmatpush1.msra.mxu0 0.0
        %1189 = vmatprep.subr.mxu0 0.0
        %1190 = vmatpush1.msra.mxu0 0.0
        %1191 = vmatprep.subr.mxu0 0.0
        %1192 = vmatpush1.msra.mxu0 0.0
        %1193 = vmatprep.subr.mxu0 0.0
        %1194 = vmatpush1.msra.mxu0 0.0
        %1195 = vmatprep.subr.mxu0 0.0
        %1196 = vmatpush1.msra.mxu0 0.0
        %1197 = vmatprep.subr.mxu0 0.0
        %1198 = vmatpush1.msra.mxu0 0.0
        %1199 = vmatprep.subr.mxu0 0.0
        %1200 = vmatpush1.msra.mxu0 0.0
        %1201 = vmatprep.subr.mxu0 0.0
        %1202 = vmatpush1.msra.mxu0 0.0
        %1203 = vmatprep.subr.mxu0 0.0
        %1204 = vmatpush1.msra.mxu0 0.0
        %1205 = vmatprep.subr.mxu0 0.0
        %1206 = vmatpush1.msra.mxu0 0.0
        %1207 = vmatprep.subr.mxu0 0.0
        %1208 = vmatpush1.msra.mxu0 0.0
        %1209 = vmatprep.subr.mxu0 0.0
        %1210 = vmatpush1.msra.mxu0 0.0
        %1211 = vmatprep.subr.mxu0 0.0
        %1212 = vmatpush1.msra.mxu0 0.0
        %1213 = vmatprep.subr.mxu0 0.0
        %1214 = vmatpush1.msra.mxu0 0.0
        %1215 = vmatprep.subr.mxu0 0.0
        %1216 = vmatpush1.msra.mxu0 0.0
        %1217 = vmatprep.subr.mxu0 0.0
        %1218 = vmatpush1.msra.mxu0 0.0
        %1219 = vmatprep.subr.mxu0 0.0
        %1220 = vmatpush1.msra.mxu0 0.0
        %1221 = vmatprep.subr.mxu0 0.0
        %1222 = vmatpush1.msra.mxu0 0.0
        %1223 = vmatprep.mubr.f32.mxu0 0.0
        %1224 = vmatmul.mubr.f32.gmra.mrb[0].mxu0 %v1112
        %v1225 = vpop.f32.mrb[0].mxu0
        %v1226 = vadd.f32 0.0, %v1225
        %v1227 = vpop.f32.mrb[0].mxu0
        %1228 = vmatprep.mubr.f32.mxu0 0.0
        %1229 = vmatmul.mubr.f32.gmra.mrb[0].mxu0 %v1115
        %v1230 = vpop.f32.mrb[0].mxu0
        %v1231 = vadd.f32 0.0, %v1230
        %v1232 = vpop.f32.mrb[0].mxu0
        %1233 = vmatprep.mubr.f32.mxu0 0.0
        %1234 = vmatmul.mubr.f32.gmra.mrb[0].mxu0 %v1118
        %v1235 = vpop.f32.mrb[0].mxu0
        %v1236 = vadd.f32 0.0, %v1235
        %v1237 = vpop.f32.mrb[0].mxu0
        %1238 = vmatprep.mubr.f32.mxu0 0.0
        %1239 = vmatmul.mubr.f32.gmra.mrb[0].mxu0 %v1121
        %v1240 = vpop.f32.mrb[0].mxu0
        %v1241 = vadd.f32 0.0, %v1240
        %v1242 = vpop.f32.mrb[0].mxu0
        %1243 = vmatprep.mubr.f32.mxu0 0.0
        %1244 = vmatmul.mubr.f32.gmra.mrb[0].mxu0 %v1124
        %v1245 = vpop.f32.mrb[0].mxu0
        %v1246 = vadd.f32 0.0, %v1245
        %v1247 = vpop.f32.mrb[0].mxu0
        %1248 = vmatprep.mubr.f32.mxu0 0.0
        %1249 = vmatmul.mubr.f32.gmra.mrb[0].mxu0 %v1127
        %v1250 = vpop.f32.mrb[0].mxu0
        %v1251 = vadd.f32 0.0, %v1250
        %v1252 = vpop.f32.mrb[0].mxu0
        %1253 = vmatprep.mubr.f32.mxu0 0.0
        %1254 = vmatmul.mubr.f32.gmra.mrb[0].mxu0 %v1130
        %v1255 = vpop.f32.mrb[0].mxu0
        %v1256 = vadd.f32 0.0, %v1255
        %v1257 = vpop.f32.mrb[0].mxu0
        %1258 = vmatprep.mubr.f32.mxu0 0.0
        %1259 = vmatmul.mubr.f32.gmra.mrb[0].mxu0 %v1133
        %v1260 = vpop.f32.mrb[0].mxu0
        %v1261 = vadd.f32 0.0, %v1260
        %v1262 = vpop.f32.mrb[0].mxu0
        %1263 = vmatprep.mubr.f32.mxu0 0.0
        %1264 = vmatmul.mubr.f32.gmra.mrb[0].mxu0 %v1136
        %v1265 = vpop.f32.mrb[0].mxu0
        %v1266 = vadd.f32 0.0, %v1265
        %v1267 = vpop.f32.mrb[0].mxu0
        %1268 = vmatprep.mubr.f32.mxu0 0.0
        %1269 = vmatmul.mubr.f32.gmra.mrb[0].mxu0 %v1139
        %v1270 = vpop.f32.mrb[0].mxu0
        %v1271 = vadd.f32 0.0, %v1270
        %v1272 = vpop.f32.mrb[0].mxu0
        %1273 = vmatprep.mubr.f32.mxu0 0.0
        %1274 = vmatmul.mubr.f32.gmra.mrb[0].mxu0 %v1142
        %v1275 = vpop.f32.mrb[0].mxu0
        %v1276 = vadd.f32 0.0, %v1275
        %v1277 = vpop.f32.mrb[0].mxu0
        %1278 = vmatprep.mubr.f32.mxu0 0.0
        %1279 = vmatmul.mubr.f32.gmra.mrb[0].mxu0 %v1145
        %v1280 = vpop.f32.mrb[0].mxu0
        %v1281 = vadd.f32 0.0, %v1280
        %v1282 = vpop.f32.mrb[0].mxu0
        %1283 = vmatprep.mubr.f32.mxu0 0.0
        %1284 = vmatmul.mubr.f32.gmra.mrb[0].mxu0 %v1148
        %v1285 = vpop.f32.mrb[0].mxu0
        %v1286 = vadd.f32 0.0, %v1285
        %v1287 = vpop.f32.mrb[0].mxu0
        %1288 = vmatprep.mubr.f32.mxu0 0.0
        %1289 = vmatmul.mubr.f32.gmra.mrb[0].mxu0 %v1151
        %v1290 = vpop.f32.mrb[0].mxu0
        %v1291 = vadd.f32 0.0, %v1290
        %v1292 = vpop.f32.mrb[0].mxu0
        %1293 = vmatprep.mubr.f32.mxu0 0.0
        %1294 = vmatmul.mubr.f32.gmra.mrb[0].mxu0 %v1154
        %v1295 = vpop.f32.mrb[0].mxu0
        %v1296 = vadd.f32 0.0, %v1295
        %v1297 = vpop.f32.mrb[0].mxu0
        %1298 = vmatprep.mubr.f32.mxu0 0.0
        %1299 = vmatmul.mubr.f32.gmra.mrb[0].mxu0 %v1157
        %v1300 = vpop.f32.mrb[0].mxu0
        %v1301 = vadd.f32 0.0, %v1300
        %v1302 = vpop.f32.mrb[0].mxu0
        %1303 = vdwg.mxu0
        %v1305 = vsel %vm211, %v1074, 0
        %v1308 = vsel %vm211, %v1075, 0
        %v1311 = vsel %vm211, %v1076, 0
        %v1314 = vsel %vm211, %v1077, 0
        %v1317 = vsel %vm211, %v1078, 0
        %v1320 = vsel %vm211, %v1079, 0
        %v1323 = vsel %vm211, %v1080, 0
        %v1326 = vsel %vm211, %v1081, 0
        %v1329 = vsel %vm211, %v1082, 0
        %v1332 = vsel %vm211, %v1083, 0
        %v1335 = vsel %vm211, %v1084, 0
        %v1338 = vsel %vm211, %v1085, 0
        %v1341 = vsel %vm211, %v1086, 0
        %v1344 = vsel %vm211, %v1087, 0
        %v1347 = vsel %vm211, %v1088, 0
        %v1350 = vsel %vm211, %v1089, 0
        %1352 = vmatprep.subr.mxu0 0.0
        %1353 = vmatpush1.msra.mxu0 %v1090
        %1354 = vmatprep.subr.mxu0 0.0
        %1355 = vmatpush1.msra.mxu0 %v1091
        %1356 = vmatprep.subr.mxu0 0.0
        %1357 = vmatpush1.msra.mxu0 0.0
        %1358 = vmatprep.subr.mxu0 0.0
        %1359 = vmatpush1.msra.mxu0 0.0
        %1360 = vmatprep.subr.mxu0 0.0
        %1361 = vmatpush1.msra.mxu0 0.0
        %1362 = vmatprep.subr.mxu0 0.0
        %1363 = vmatpush1.msra.mxu0 0.0
        %1364 = vmatprep.subr.mxu0 0.0
        %1365 = vmatpush1.msra.mxu0 0.0
        %1366 = vmatprep.subr.mxu0 0.0
        %1367 = vmatpush1.msra.mxu0 0.0
        %1368 = vmatprep.subr.mxu0 0.0
        %1369 = vmatpush1.msra.mxu0 0.0
        %1370 = vmatprep.subr.mxu0 0.0
        %1371 = vmatpush1.msra.mxu0 0.0
        %1372 = vmatprep.subr.mxu0 0.0
        %1373 = vmatpush1.msra.mxu0 0.0
        %1374 = vmatprep.subr.mxu0 0.0
        %1375 = vmatpush1.msra.mxu0 0.0
        %1376 = vmatprep.subr.mxu0 0.0
        %1377 = vmatpush1.msra.mxu0 0.0
        %1378 = vmatprep.subr.mxu0 0.0
        %1379 = vmatpush1.msra.mxu0 0.0
        %1380 = vmatprep.subr.mxu0 0.0
        %1381 = vmatpush1.msra.mxu0 0.0
        %1382 = vmatprep.subr.mxu0 0.0
        %1383 = vmatpush1.msra.mxu0 0.0
        %1384 = vmatprep.subr.mxu0 0.0
        %1385 = vmatpush1.msra.mxu0 0.0
        %1386 = vmatprep.subr.mxu0 0.0
        %1387 = vmatpush1.msra.mxu0 0.0
        %1388 = vmatprep.subr.mxu0 0.0
        %1389 = vmatpush1.msra.mxu0 0.0
        %1390 = vmatprep.subr.mxu0 0.0
        %1391 = vmatpush1.msra.mxu0 0.0
        %1392 = vmatprep.subr.mxu0 0.0
        %1393 = vmatpush1.msra.mxu0 0.0
        %1394 = vmatprep.subr.mxu0 0.0
        %1395 = vmatpush1.msra.mxu0 0.0
        %1396 = vmatprep.subr.mxu0 0.0
        %1397 = vmatpush1.msra.mxu0 0.0
        %1398 = vmatprep.subr.mxu0 0.0
        %1399 = vmatpush1.msra.mxu0 0.0
        %1400 = vmatprep.subr.mxu0 0.0
        %1401 = vmatpush1.msra.mxu0 0.0
        %1402 = vmatprep.subr.mxu0 0.0
        %1403 = vmatpush1.msra.mxu0 0.0
        %1404 = vmatprep.subr.mxu0 0.0
        %1405 = vmatpush1.msra.mxu0 0.0
        %1406 = vmatprep.subr.mxu0 0.0
        %1407 = vmatpush1.msra.mxu0 0.0
        %1408 = vmatprep.subr.mxu0 0.0
        %1409 = vmatpush1.msra.mxu0 0.0
        %1410 = vmatprep.subr.mxu0 0.0
        %1411 = vmatpush1.msra.mxu0 0.0
        %1412 = vmatprep.subr.mxu0 0.0
        %1413 = vmatpush1.msra.mxu0 0.0
        %1414 = vmatprep.subr.mxu0 0.0
        %1415 = vmatpush1.msra.mxu0 0.0
        %1416 = vmatprep.mubr.f32.mxu0 0.0
        %1417 = vmatmul.mubr.f32.gmra.mrb[0].mxu0 %v1305
        %v1418 = vpop.f32.mrb[0].mxu0
        %v1419 = vadd.f32 %v1226, %v1418
        %v1420 = vpop.f32.mrb[0].mxu0
        %1421 = vmatprep.mubr.f32.mxu0 0.0
        %1422 = vmatmul.mubr.f32.gmra.mrb[0].mxu0 %v1308
        %v1423 = vpop.f32.mrb[0].mxu0
        %v1424 = vadd.f32 %v1231, %v1423
        %v1425 = vpop.f32.mrb[0].mxu0
        %1426 = vmatprep.mubr.f32.mxu0 0.0
        %1427 = vmatmul.mubr.f32.gmra.mrb[0].mxu0 %v1311
        %v1428 = vpop.f32.mrb[0].mxu0
        %v1429 = vadd.f32 %v1236, %v1428
        %v1430 = vpop.f32.mrb[0].mxu0
        %1431 = vmatprep.mubr.f32.mxu0 0.0
        %1432 = vmatmul.mubr.f32.gmra.mrb[0].mxu0 %v1314
        %v1433 = vpop.f32.mrb[0].mxu0
        %v1434 = vadd.f32 %v1241, %v1433
        %v1435 = vpop.f32.mrb[0].mxu0
        %1436 = vmatprep.mubr.f32.mxu0 0.0
        %1437 = vmatmul.mubr.f32.gmra.mrb[0].mxu0 %v1317
        %v1438 = vpop.f32.mrb[0].mxu0
        %v1439 = vadd.f32 %v1246, %v1438
        %v1440 = vpop.f32.mrb[0].mxu0
        %1441 = vmatprep.mubr.f32.mxu0 0.0
        %1442 = vmatmul.mubr.f32.gmra.mrb[0].mxu0 %v1320
        %v1443 = vpop.f32.mrb[0].mxu0
        %v1444 = vadd.f32 %v1251, %v1443
        %v1445 = vpop.f32.mrb[0].mxu0
        %1446 = vmatprep.mubr.f32.mxu0 0.0
        %1447 = vmatmul.mubr.f32.gmra.mrb[0].mxu0 %v1323
        %v1448 = vpop.f32.mrb[0].mxu0
        %v1449 = vadd.f32 %v1256, %v1448
        %v1450 = vpop.f32.mrb[0].mxu0
        %1451 = vmatprep.mubr.f32.mxu0 0.0
        %1452 = vmatmul.mubr.f32.gmra.mrb[0].mxu0 %v1326
        %v1453 = vpop.f32.mrb[0].mxu0
        %v1454 = vadd.f32 %v1261, %v1453
        %v1455 = vpop.f32.mrb[0].mxu0
        %1456 = vmatprep.mubr.f32.mxu0 0.0
        %1457 = vmatmul.mubr.f32.gmra.mrb[0].mxu0 %v1329
        %v1458 = vpop.f32.mrb[0].mxu0
        %v1459 = vadd.f32 %v1266, %v1458
        %v1460 = vpop.f32.mrb[0].mxu0
        %1461 = vmatprep.mubr.f32.mxu0 0.0
        %1462 = vmatmul.mubr.f32.gmra.mrb[0].mxu0 %v1332
        %v1463 = vpop.f32.mrb[0].mxu0
        %v1464 = vadd.f32 %v1271, %v1463
        %v1465 = vpop.f32.mrb[0].mxu0
        %1466 = vmatprep.mubr.f32.mxu0 0.0
        %1467 = vmatmul.mubr.f32.gmra.mrb[0].mxu0 %v1335
        %v1468 = vpop.f32.mrb[0].mxu0
        %v1469 = vadd.f32 %v1276, %v1468
        %v1470 = vpop.f32.mrb[0].mxu0
        %1471 = vmatprep.mubr.f32.mxu0 0.0
        %1472 = vmatmul.mubr.f32.gmra.mrb[0].mxu0 %v1338
        %v1473 = vpop.f32.mrb[0].mxu0
        %v1474 = vadd.f32 %v1281, %v1473
        %v1475 = vpop.f32.mrb[0].mxu0
        %1476 = vmatprep.mubr.f32.mxu0 0.0
        %1477 = vmatmul.mubr.f32.gmra.mrb[0].mxu0 %v1341
        %v1478 = vpop.f32.mrb[0].mxu0
        %v1479 = vadd.f32 %v1286, %v1478
        %v1480 = vpop.f32.mrb[0].mxu0
        %1481 = vmatprep.mubr.f32.mxu0 0.0
        %1482 = vmatmul.mubr.f32.gmra.mrb[0].mxu0 %v1344
        %v1483 = vpop.f32.mrb[0].mxu0
        %v1484 = vadd.f32 %v1291, %v1483
        %v1485 = vpop.f32.mrb[0].mxu0
        %1486 = vmatprep.mubr.f32.mxu0 0.0
        %1487 = vmatmul.mubr.f32.gmra.mrb[0].mxu0 %v1347
        %v1488 = vpop.f32.mrb[0].mxu0
        %v1489 = vadd.f32 %v1296, %v1488
        %v1490 = vpop.f32.mrb[0].mxu0
        %1491 = vmatprep.mubr.f32.mxu0 0.0
        %1492 = vmatmul.mubr.f32.gmra.mrb[0].mxu0 %v1350
        %v1493 = vpop.f32.mrb[0].mxu0
        %v1494 = vadd.f32 %v1301, %v1493
        %v1495 = vpop.f32.mrb[0].mxu0
        %1496 = vdwg.mxu0
        %s1497 = scalar_lea.vmem %s170, 768
        %v1498 = vld [vmem:[%s1497] sm:$0xff]
        %v1499 = vld [vmem:[%s1497 + $0x8] sm:$0xff]
        %v1500 = vld [vmem:[%s1497 + $0x10] sm:$0xff]
        %v1501 = vld [vmem:[%s1497 + $0x18] sm:$0xff]
        %v1502 = vld [vmem:[%s1497 + $0x20] sm:$0xff]
        %v1503 = vld [vmem:[%s1497 + $0x28] sm:$0xff]
        %v1504 = vld [vmem:[%s1497 + $0x30] sm:$0xff]
        %v1505 = vld [vmem:[%s1497 + $0x38] sm:$0xff]
        %v1506 = vld [vmem:[%s1497 + $0x40] sm:$0xff]
        %v1507 = vld [vmem:[%s1497 + $0x48] sm:$0xff]
        %v1508 = vld [vmem:[%s1497 + $0x50] sm:$0xff]
        %v1509 = vld [vmem:[%s1497 + $0x58] sm:$0xff]
        %v1510 = vld [vmem:[%s1497 + $0x60] sm:$0xff]
        %v1511 = vld [vmem:[%s1497 + $0x68] sm:$0xff]
        %v1512 = vld [vmem:[%s1497 + $0x70] sm:$0xff]
        %v1513 = vld [vmem:[%s1497 + $0x78] sm:$0xff]
        %v1514 = vld [vmem:[%s615] sm:$0xff]
        %v1515 = vld [vmem:[%s615 + $0x8] sm:$0xff]
        %v1517 = vsel %vm211, %v1498, 0
        %v1520 = vsel %vm211, %v1499, 0
        %v1523 = vsel %vm211, %v1500, 0
        %v1526 = vsel %vm211, %v1501, 0
        %v1529 = vsel %vm211, %v1502, 0
        %v1532 = vsel %vm211, %v1503, 0
        %v1535 = vsel %vm211, %v1504, 0
        %v1538 = vsel %vm211, %v1505, 0
        %v1541 = vsel %vm211, %v1506, 0
        %v1544 = vsel %vm211, %v1507, 0
        %v1547 = vsel %vm211, %v1508, 0
        %v1550 = vsel %vm211, %v1509, 0
        %v1553 = vsel %vm211, %v1510, 0
        %v1556 = vsel %vm211, %v1511, 0
        %v1559 = vsel %vm211, %v1512, 0
        %v1562 = vsel %vm211, %v1513, 0
        %1564 = vmatprep.subr.mxu0 0.0
        %1565 = vmatpush1.msra.mxu0 %v1514
        %1566 = vmatprep.subr.mxu0 0.0
        %1567 = vmatpush1.msra.mxu0 %v1515
        %1568 = vmatprep.subr.mxu0 0.0
        %1569 = vmatpush1.msra.mxu0 0.0
        %1570 = vmatprep.subr.mxu0 0.0
        %1571 = vmatpush1.msra.mxu0 0.0
        %1572 = vmatprep.subr.mxu0 0.0
        %1573 = vmatpush1.msra.mxu0 0.0
        %1574 = vmatprep.subr.mxu0 0.0
        %1575 = vmatpush1.msra.mxu0 0.0
        %1576 = vmatprep.subr.mxu0 0.0
        %1577 = vmatpush1.msra.mxu0 0.0
        %1578 = vmatprep.subr.mxu0 0.0
        %1579 = vmatpush1.msra.mxu0 0.0
        %1580 = vmatprep.subr.mxu0 0.0
        %1581 = vmatpush1.msra.mxu0 0.0
        %1582 = vmatprep.subr.mxu0 0.0
        %1583 = vmatpush1.msra.mxu0 0.0
        %1584 = vmatprep.subr.mxu0 0.0
        %1585 = vmatpush1.msra.mxu0 0.0
        %1586 = vmatprep.subr.mxu0 0.0
        %1587 = vmatpush1.msra.mxu0 0.0
        %1588 = vmatprep.subr.mxu0 0.0
        %1589 = vmatpush1.msra.mxu0 0.0
        %1590 = vmatprep.subr.mxu0 0.0
        %1591 = vmatpush1.msra.mxu0 0.0
        %1592 = vmatprep.subr.mxu0 0.0
        %1593 = vmatpush1.msra.mxu0 0.0
        %1594 = vmatprep.subr.mxu0 0.0
        %1595 = vmatpush1.msra.mxu0 0.0
        %1596 = vmatprep.subr.mxu0 0.0
        %1597 = vmatpush1.msra.mxu0 0.0
        %1598 = vmatprep.subr.mxu0 0.0
        %1599 = vmatpush1.msra.mxu0 0.0
        %1600 = vmatprep.subr.mxu0 0.0
        %1601 = vmatpush1.msra.mxu0 0.0
        %1602 = vmatprep.subr.mxu0 0.0
        %1603 = vmatpush1.msra.mxu0 0.0
        %1604 = vmatprep.subr.mxu0 0.0
        %1605 = vmatpush1.msra.mxu0 0.0
        %1606 = vmatprep.subr.mxu0 0.0
        %1607 = vmatpush1.msra.mxu0 0.0
        %1608 = vmatprep.subr.mxu0 0.0
        %1609 = vmatpush1.msra.mxu0 0.0
        %1610 = vmatprep.subr.mxu0 0.0
        %1611 = vmatpush1.msra.mxu0 0.0
        %1612 = vmatprep.subr.mxu0 0.0
        %1613 = vmatpush1.msra.mxu0 0.0
        %1614 = vmatprep.subr.mxu0 0.0
        %1615 = vmatpush1.msra.mxu0 0.0
        %1616 = vmatprep.subr.mxu0 0.0
        %1617 = vmatpush1.msra.mxu0 0.0
        %1618 = vmatprep.subr.mxu0 0.0
        %1619 = vmatpush1.msra.mxu0 0.0
        %1620 = vmatprep.subr.mxu0 0.0
        %1621 = vmatpush1.msra.mxu0 0.0
        %1622 = vmatprep.subr.mxu0 0.0
        %1623 = vmatpush1.msra.mxu0 0.0
        %1624 = vmatprep.subr.mxu0 0.0
        %1625 = vmatpush1.msra.mxu0 0.0
        %1626 = vmatprep.subr.mxu0 0.0
        %1627 = vmatpush1.msra.mxu0 0.0
        %1628 = vmatprep.mubr.f32.mxu0 0.0
        %1629 = vmatmul.mubr.f32.gmra.mrb[0].mxu0 %v1517
        %v1630 = vpop.f32.mrb[0].mxu0
        %v1631 = vadd.f32 0.0, %v1630
        %v1632 = vpop.f32.mrb[0].mxu0
        %1633 = vmatprep.mubr.f32.mxu0 0.0
        %1634 = vmatmul.mubr.f32.gmra.mrb[0].mxu0 %v1520
        %v1635 = vpop.f32.mrb[0].mxu0
        %v1636 = vadd.f32 0.0, %v1635
        %v1637 = vpop.f32.mrb[0].mxu0
        %1638 = vmatprep.mubr.f32.mxu0 0.0
        %1639 = vmatmul.mubr.f32.gmra.mrb[0].mxu0 %v1523
        %v1640 = vpop.f32.mrb[0].mxu0
        %v1641 = vadd.f32 0.0, %v1640
        %v1642 = vpop.f32.mrb[0].mxu0
        %1643 = vmatprep.mubr.f32.mxu0 0.0
        %1644 = vmatmul.mubr.f32.gmra.mrb[0].mxu0 %v1526
        %v1645 = vpop.f32.mrb[0].mxu0
        %v1646 = vadd.f32 0.0, %v1645
        %v1647 = vpop.f32.mrb[0].mxu0
        %1648 = vmatprep.mubr.f32.mxu0 0.0
        %1649 = vmatmul.mubr.f32.gmra.mrb[0].mxu0 %v1529
        %v1650 = vpop.f32.mrb[0].mxu0
        %v1651 = vadd.f32 0.0, %v1650
        %v1652 = vpop.f32.mrb[0].mxu0
        %1653 = vmatprep.mubr.f32.mxu0 0.0
        %1654 = vmatmul.mubr.f32.gmra.mrb[0].mxu0 %v1532
        %v1655 = vpop.f32.mrb[0].mxu0
        %v1656 = vadd.f32 0.0, %v1655
        %v1657 = vpop.f32.mrb[0].mxu0
        %1658 = vmatprep.mubr.f32.mxu0 0.0
        %1659 = vmatmul.mubr.f32.gmra.mrb[0].mxu0 %v1535
        %v1660 = vpop.f32.mrb[0].mxu0
        %v1661 = vadd.f32 0.0, %v1660
        %v1662 = vpop.f32.mrb[0].mxu0
        %1663 = vmatprep.mubr.f32.mxu0 0.0
        %1664 = vmatmul.mubr.f32.gmra.mrb[0].mxu0 %v1538
        %v1665 = vpop.f32.mrb[0].mxu0
        %v1666 = vadd.f32 0.0, %v1665
        %v1667 = vpop.f32.mrb[0].mxu0
        %1668 = vmatprep.mubr.f32.mxu0 0.0
        %1669 = vmatmul.mubr.f32.gmra.mrb[0].mxu0 %v1541
        %v1670 = vpop.f32.mrb[0].mxu0
        %v1671 = vadd.f32 0.0, %v1670
        %v1672 = vpop.f32.mrb[0].mxu0
        %1673 = vmatprep.mubr.f32.mxu0 0.0
        %1674 = vmatmul.mubr.f32.gmra.mrb[0].mxu0 %v1544
        %v1675 = vpop.f32.mrb[0].mxu0
        %v1676 = vadd.f32 0.0, %v1675
        %v1677 = vpop.f32.mrb[0].mxu0
        %1678 = vmatprep.mubr.f32.mxu0 0.0
        %1679 = vmatmul.mubr.f32.gmra.mrb[0].mxu0 %v1547
        %v1680 = vpop.f32.mrb[0].mxu0
        %v1681 = vadd.f32 0.0, %v1680
        %v1682 = vpop.f32.mrb[0].mxu0
        %1683 = vmatprep.mubr.f32.mxu0 0.0
        %1684 = vmatmul.mubr.f32.gmra.mrb[0].mxu0 %v1550
        %v1685 = vpop.f32.mrb[0].mxu0
        %v1686 = vadd.f32 0.0, %v1685
        %v1687 = vpop.f32.mrb[0].mxu0
        %1688 = vmatprep.mubr.f32.mxu0 0.0
        %1689 = vmatmul.mubr.f32.gmra.mrb[0].mxu0 %v1553
        %v1690 = vpop.f32.mrb[0].mxu0
        %v1691 = vadd.f32 0.0, %v1690
        %v1692 = vpop.f32.mrb[0].mxu0
        %1693 = vmatprep.mubr.f32.mxu0 0.0
        %1694 = vmatmul.mubr.f32.gmra.mrb[0].mxu0 %v1556
        %v1695 = vpop.f32.mrb[0].mxu0
        %v1696 = vadd.f32 0.0, %v1695
        %v1697 = vpop.f32.mrb[0].mxu0
        %1698 = vmatprep.mubr.f32.mxu0 0.0
        %1699 = vmatmul.mubr.f32.gmra.mrb[0].mxu0 %v1559
        %v1700 = vpop.f32.mrb[0].mxu0
        %v1701 = vadd.f32 0.0, %v1700
        %v1702 = vpop.f32.mrb[0].mxu0
        %1703 = vmatprep.mubr.f32.mxu0 0.0
        %1704 = vmatmul.mubr.f32.gmra.mrb[0].mxu0 %v1562
        %v1705 = vpop.f32.mrb[0].mxu0
        %v1706 = vadd.f32 0.0, %v1705
        %v1707 = vpop.f32.mrb[0].mxu0
        %1708 = vdwg.mxu0
        %v1709 = vadd.f32 %v1419, %v1631
        %v1710 = vadd.f32 %v1424, %v1636
        %v1711 = vadd.f32 %v1429, %v1641
        %v1712 = vadd.f32 %v1434, %v1646
        %v1713 = vadd.f32 %v1439, %v1651
        %v1714 = vadd.f32 %v1444, %v1656
        %v1715 = vadd.f32 %v1449, %v1661
        %v1716 = vadd.f32 %v1454, %v1666
        %v1717 = vadd.f32 %v1459, %v1671
        %v1718 = vadd.f32 %v1464, %v1676
        %v1719 = vadd.f32 %v1469, %v1681
        %v1720 = vadd.f32 %v1474, %v1686
        %v1721 = vadd.f32 %v1479, %v1691
        %v1722 = vadd.f32 %v1484, %v1696
        %v1723 = vadd.f32 %v1489, %v1701
        %v1724 = vadd.f32 %v1494, %v1706
        %s1725 = scalar_lea.vmem %s170, 896
        %v1726 = vld [vmem:[%s1725] sm:$0xff]
        %v1727 = vld [vmem:[%s1725 + $0x8] sm:$0xff]
        %v1728 = vld [vmem:[%s1725 + $0x10] sm:$0xff]
        %v1729 = vld [vmem:[%s1725 + $0x18] sm:$0xff]
        %v1730 = vld [vmem:[%s1725 + $0x20] sm:$0xff]
        %v1731 = vld [vmem:[%s1725 + $0x28] sm:$0xff]
        %v1732 = vld [vmem:[%s1725 + $0x30] sm:$0xff]
        %v1733 = vld [vmem:[%s1725 + $0x38] sm:$0xff]
        %v1734 = vld [vmem:[%s1725 + $0x40] sm:$0xff]
        %v1735 = vld [vmem:[%s1725 + $0x48] sm:$0xff]
        %v1736 = vld [vmem:[%s1725 + $0x50] sm:$0xff]
        %v1737 = vld [vmem:[%s1725 + $0x58] sm:$0xff]
        %v1738 = vld [vmem:[%s1725 + $0x60] sm:$0xff]
        %v1739 = vld [vmem:[%s1725 + $0x68] sm:$0xff]
        %v1740 = vld [vmem:[%s1725 + $0x70] sm:$0xff]
        %v1741 = vld [vmem:[%s1725 + $0x78] sm:$0xff]
        %v1742 = vld [vmem:[%s844] sm:$0xff]
        %v1743 = vld [vmem:[%s844 + $0x8] sm:$0xff]
        %v1745 = vsel %vm211, %v1726, 0
        %v1748 = vsel %vm211, %v1727, 0
        %v1751 = vsel %vm211, %v1728, 0
        %v1754 = vsel %vm211, %v1729, 0
        %v1757 = vsel %vm211, %v1730, 0
        %v1760 = vsel %vm211, %v1731, 0
        %v1763 = vsel %vm211, %v1732, 0
        %v1766 = vsel %vm211, %v1733, 0
        %v1769 = vsel %vm211, %v1734, 0
        %v1772 = vsel %vm211, %v1735, 0
        %v1775 = vsel %vm211, %v1736, 0
        %v1778 = vsel %vm211, %v1737, 0
        %v1781 = vsel %vm211, %v1738, 0
        %v1784 = vsel %vm211, %v1739, 0
        %v1787 = vsel %vm211, %v1740, 0
        %v1790 = vsel %vm211, %v1741, 0
        %1792 = vmatprep.subr.mxu0 0.0
        %1793 = vmatpush1.msra.mxu0 %v1742
        %1794 = vmatprep.subr.mxu0 0.0
        %1795 = vmatpush1.msra.mxu0 %v1743
        %1796 = vmatprep.subr.mxu0 0.0
        %1797 = vmatpush1.msra.mxu0 0.0
        %1798 = vmatprep.subr.mxu0 0.0
        %1799 = vmatpush1.msra.mxu0 0.0
        %1800 = vmatprep.subr.mxu0 0.0
        %1801 = vmatpush1.msra.mxu0 0.0
        %1802 = vmatprep.subr.mxu0 0.0
        %1803 = vmatpush1.msra.mxu0 0.0
        %1804 = vmatprep.subr.mxu0 0.0
        %1805 = vmatpush1.msra.mxu0 0.0
        %1806 = vmatprep.subr.mxu0 0.0
        %1807 = vmatpush1.msra.mxu0 0.0
        %1808 = vmatprep.subr.mxu0 0.0
        %1809 = vmatpush1.msra.mxu0 0.0
        %1810 = vmatprep.subr.mxu0 0.0
        %1811 = vmatpush1.msra.mxu0 0.0
        %1812 = vmatprep.subr.mxu0 0.0
        %1813 = vmatpush1.msra.mxu0 0.0
        %1814 = vmatprep.subr.mxu0 0.0
        %1815 = vmatpush1.msra.mxu0 0.0
        %1816 = vmatprep.subr.mxu0 0.0
        %1817 = vmatpush1.msra.mxu0 0.0
        %1818 = vmatprep.subr.mxu0 0.0
        %1819 = vmatpush1.msra.mxu0 0.0
        %1820 = vmatprep.subr.mxu0 0.0
        %1821 = vmatpush1.msra.mxu0 0.0
        %1822 = vmatprep.subr.mxu0 0.0
        %1823 = vmatpush1.msra.mxu0 0.0
        %1824 = vmatprep.subr.mxu0 0.0
        %1825 = vmatpush1.msra.mxu0 0.0
        %1826 = vmatprep.subr.mxu0 0.0
        %1827 = vmatpush1.msra.mxu0 0.0
        %1828 = vmatprep.subr.mxu0 0.0
        %1829 = vmatpush1.msra.mxu0 0.0
        %1830 = vmatprep.subr.mxu0 0.0
        %1831 = vmatpush1.msra.mxu0 0.0
        %1832 = vmatprep.subr.mxu0 0.0
        %1833 = vmatpush1.msra.mxu0 0.0
        %1834 = vmatprep.subr.mxu0 0.0
        %1835 = vmatpush1.msra.mxu0 0.0
        %1836 = vmatprep.subr.mxu0 0.0
        %1837 = vmatpush1.msra.mxu0 0.0
        %1838 = vmatprep.subr.mxu0 0.0
        %1839 = vmatpush1.msra.mxu0 0.0
        %1840 = vmatprep.subr.mxu0 0.0
        %1841 = vmatpush1.msra.mxu0 0.0
        %1842 = vmatprep.subr.mxu0 0.0
        %1843 = vmatpush1.msra.mxu0 0.0
        %1844 = vmatprep.subr.mxu0 0.0
        %1845 = vmatpush1.msra.mxu0 0.0
        %1846 = vmatprep.subr.mxu0 0.0
        %1847 = vmatpush1.msra.mxu0 0.0
        %1848 = vmatprep.subr.mxu0 0.0
        %1849 = vmatpush1.msra.mxu0 0.0
        %1850 = vmatprep.subr.mxu0 0.0
        %1851 = vmatpush1.msra.mxu0 0.0
        %1852 = vmatprep.subr.mxu0 0.0
        %1853 = vmatpush1.msra.mxu0 0.0
        %1854 = vmatprep.subr.mxu0 0.0
        %1855 = vmatpush1.msra.mxu0 0.0
        %1856 = vmatprep.mubr.f32.mxu0 0.0
        %1857 = vmatmul.mubr.f32.gmra.mrb[0].mxu0 %v1745
        %v1858 = vpop.f32.mrb[0].mxu0
        %v1859 = vadd.f32 0.0, %v1858
        %v1860 = vpop.f32.mrb[0].mxu0
        %1861 = vmatprep.mubr.f32.mxu0 0.0
        %1862 = vmatmul.mubr.f32.gmra.mrb[0].mxu0 %v1748
        %v1863 = vpop.f32.mrb[0].mxu0
        %v1864 = vadd.f32 0.0, %v1863
        %v1865 = vpop.f32.mrb[0].mxu0
        %1866 = vmatprep.mubr.f32.mxu0 0.0
        %1867 = vmatmul.mubr.f32.gmra.mrb[0].mxu0 %v1751
        %v1868 = vpop.f32.mrb[0].mxu0
        %v1869 = vadd.f32 0.0, %v1868
        %v1870 = vpop.f32.mrb[0].mxu0
        %1871 = vmatprep.mubr.f32.mxu0 0.0
        %1872 = vmatmul.mubr.f32.gmra.mrb[0].mxu0 %v1754
        %v1873 = vpop.f32.mrb[0].mxu0
        %v1874 = vadd.f32 0.0, %v1873
        %v1875 = vpop.f32.mrb[0].mxu0
        %1876 = vmatprep.mubr.f32.mxu0 0.0
        %1877 = vmatmul.mubr.f32.gmra.mrb[0].mxu0 %v1757
        %v1878 = vpop.f32.mrb[0].mxu0
        %v1879 = vadd.f32 0.0, %v1878
        %v1880 = vpop.f32.mrb[0].mxu0
        %1881 = vmatprep.mubr.f32.mxu0 0.0
        %1882 = vmatmul.mubr.f32.gmra.mrb[0].mxu0 %v1760
        %v1883 = vpop.f32.mrb[0].mxu0
        %v1884 = vadd.f32 0.0, %v1883
        %v1885 = vpop.f32.mrb[0].mxu0
        %1886 = vmatprep.mubr.f32.mxu0 0.0
        %1887 = vmatmul.mubr.f32.gmra.mrb[0].mxu0 %v1763
        %v1888 = vpop.f32.mrb[0].mxu0
        %v1889 = vadd.f32 0.0, %v1888
        %v1890 = vpop.f32.mrb[0].mxu0
        %1891 = vmatprep.mubr.f32.mxu0 0.0
        %1892 = vmatmul.mubr.f32.gmra.mrb[0].mxu0 %v1766
        %v1893 = vpop.f32.mrb[0].mxu0
        %v1894 = vadd.f32 0.0, %v1893
        %v1895 = vpop.f32.mrb[0].mxu0
        %1896 = vmatprep.mubr.f32.mxu0 0.0
        %1897 = vmatmul.mubr.f32.gmra.mrb[0].mxu0 %v1769
        %v1898 = vpop.f32.mrb[0].mxu0
        %v1899 = vadd.f32 0.0, %v1898
        %v1900 = vpop.f32.mrb[0].mxu0
        %1901 = vmatprep.mubr.f32.mxu0 0.0
        %1902 = vmatmul.mubr.f32.gmra.mrb[0].mxu0 %v1772
        %v1903 = vpop.f32.mrb[0].mxu0
        %v1904 = vadd.f32 0.0, %v1903
        %v1905 = vpop.f32.mrb[0].mxu0
        %1906 = vmatprep.mubr.f32.mxu0 0.0
        %1907 = vmatmul.mubr.f32.gmra.mrb[0].mxu0 %v1775
        %v1908 = vpop.f32.mrb[0].mxu0
        %v1909 = vadd.f32 0.0, %v1908
        %v1910 = vpop.f32.mrb[0].mxu0
        %1911 = vmatprep.mubr.f32.mxu0 0.0
        %1912 = vmatmul.mubr.f32.gmra.mrb[0].mxu0 %v1778
        %v1913 = vpop.f32.mrb[0].mxu0
        %v1914 = vadd.f32 0.0, %v1913
        %v1915 = vpop.f32.mrb[0].mxu0
        %1916 = vmatprep.mubr.f32.mxu0 0.0
        %1917 = vmatmul.mubr.f32.gmra.mrb[0].mxu0 %v1781
        %v1918 = vpop.f32.mrb[0].mxu0
        %v1919 = vadd.f32 0.0, %v1918
        %v1920 = vpop.f32.mrb[0].mxu0
        %1921 = vmatprep.mubr.f32.mxu0 0.0
        %1922 = vmatmul.mubr.f32.gmra.mrb[0].mxu0 %v1784
        %v1923 = vpop.f32.mrb[0].mxu0
        %v1924 = vadd.f32 0.0, %v1923
        %v1925 = vpop.f32.mrb[0].mxu0
        %1926 = vmatprep.mubr.f32.mxu0 0.0
        %1927 = vmatmul.mubr.f32.gmra.mrb[0].mxu0 %v1787
        %v1928 = vpop.f32.mrb[0].mxu0
        %v1929 = vadd.f32 0.0, %v1928
        %v1930 = vpop.f32.mrb[0].mxu0
        %1931 = vmatprep.mubr.f32.mxu0 0.0
        %1932 = vmatmul.mubr.f32.gmra.mrb[0].mxu0 %v1790
        %v1933 = vpop.f32.mrb[0].mxu0
        %v1934 = vadd.f32 0.0, %v1933
        %v1935 = vpop.f32.mrb[0].mxu0
        %1936 = vdwg.mxu0
        %v1937 = vadd.f32 %v1709, %v1859
        %v1938 = vadd.f32 %v1710, %v1864
        %v1939 = vadd.f32 %v1711, %v1869
        %v1940 = vadd.f32 %v1712, %v1874
        %v1941 = vadd.f32 %v1713, %v1879
        %v1942 = vadd.f32 %v1714, %v1884
        %v1943 = vadd.f32 %v1715, %v1889
        %v1944 = vadd.f32 %v1716, %v1894
        %v1945 = vadd.f32 %v1717, %v1899
        %v1946 = vadd.f32 %v1718, %v1904
        %v1947 = vadd.f32 %v1719, %v1909
        %v1948 = vadd.f32 %v1720, %v1914
        %v1949 = vadd.f32 %v1721, %v1919
        %v1950 = vadd.f32 %v1722, %v1924
        %v1951 = vadd.f32 %v1723, %v1929
        %v1952 = vadd.f32 %v1724, %v1934
        %1953 = vst.msk [vmem:[%s161 + $0x10] sm:$0xff] %vm1056, %v1937
        %1954 = vst.msk [vmem:[%s161 + $0x18] sm:$0xff] %vm1056, %v1938
        %1955 = vst.msk [vmem:[%s161 + $0x30] sm:$0xff] %vm1056, %v1939
        %1956 = vst.msk [vmem:[%s161 + $0x38] sm:$0xff] %vm1056, %v1940
        %1957 = vst.msk [vmem:[%s161 + $0x50] sm:$0xff] %vm1056, %v1941
        %1958 = vst.msk [vmem:[%s161 + $0x58] sm:$0xff] %vm1056, %v1942
        %1959 = vst.msk [vmem:[%s161 + $0x70] sm:$0xff] %vm1056, %v1943
        %1960 = vst.msk [vmem:[%s161 + $0x78] sm:$0xff] %vm1056, %v1944
        %1961 = vst.msk [vmem:[%s161 + $0x90] sm:$0xff] %vm1056, %v1945
        %1962 = vst.msk [vmem:[%s161 + $0x98] sm:$0xff] %vm1056, %v1946
        %1963 = vst.msk [vmem:[%s161 + $0xb0] sm:$0xff] %vm1056, %v1947
        %1964 = vst.msk [vmem:[%s161 + $0xb8] sm:$0xff] %vm1056, %v1948
        %1965 = vst.msk [vmem:[%s161 + $0xd0] sm:$0xff] %vm1056, %v1949
        %1966 = vst.msk [vmem:[%s161 + $0xd8] sm:$0xff] %vm1056, %v1950
        %1967 = vst.msk [vmem:[%s161 + $0xf0] sm:$0xff] %vm1056, %v1951
        %1968 = vst.msk [vmem:[%s161 + $0xf8] sm:$0xff] %vm1056, %v1952
        %s1969 = sand.u32 %s87, 1
        %s1970 = scalar_lea.sflag [#allocation3], %s1969
        %s1971 = sand.u32 %s87, 1
        %s1972 = smul.addr %s1971, 256
        %s1973 = scalar_lea.vmem [#allocation2], %s1972
        // Predicated region
        $region29: #{tpu_custom_call.1} parent=27 // pred_check
          %p1974 = pneg %p97
        $region30: #{tpu_custom_call.1} parent=27 // pred_check_branch
          %1976 = sbr.rel (%p1974) target = $region32
        $region31: #{tpu_custom_call.1} parent=27 // pred_region
          %s1977 = smul.u32 8, %s21
          %s1979 = ssub.s32 4096, 4096
          %1980 = vsyncadd %s1970, %s1979
          %s1981 = smul.addr %s1977, 4
          %s1982 = smul.addr %s20, 32
          %s1983 = sadd.s32 %s1981, %s1982
          %s1984 = smul.addr %s1983, 128
          %s1985 = scalar_lea.hbm %s2, %s1984
          %s1986 = sshll.u32 %s1973, 4
          %s1987 = int_to_ptr.vmem [resolvable:$true] %s1986
          %1992 = dma.vmem_to_hbm [thread:$0]  %s1987, 4096, %s1985, %s1970, 128, 128, 8
        $region32: #{tpu_custom_call.1} parent=27 // pred_fallthru
          _
      $region28: #{tpu_custom_call.1} parent=5 // pred_fallthru
        _
      %p1993 = scmp.le.s32.totalorder 2, %s11
      // Predicated region
      $region33: #{tpu_custom_call.1} parent=5 // pred_check
        %p1994 = pneg %p1993
      $region34: #{tpu_custom_call.1} parent=5 // pred_check_branch
        %1996 = sbr.rel (%p1994) target = $region36
      $region35: #{tpu_custom_call.1} parent=5 // pred_region
        %s1997 = ssub.s32 %s11, 2
        // Predicated region
        $region37: #{tpu_custom_call.1} parent=35 // pred_check
          %p1998 = pneg %p103
        $region38: #{tpu_custom_call.1} parent=35 // pred_check_branch
          %2000 = sbr.rel (%p1998) target = $region40
        $region39: #{tpu_custom_call.1} parent=35 // pred_region
          %s2001 = sand.u32 %s88, 1
          %s2002 = scalar_lea.sflag [#allocation3], %s2001
          %s2003 = sand.u32 %s88, 1
          %s2004 = smul.addr %s2003, 256
          %s2005 = scalar_lea.vmem [#allocation2], %s2004
          %2006 = dma.done %s2002, 4096
        $region40: #{tpu_custom_call.1} parent=35 // pred_fallthru
          _
      $region36: #{tpu_custom_call.1} parent=5 // pred_fallthru
        _
    $region6: #{tpu_custom_call.1} parent=1 // loop_footer
      %s15 = sadd.s32 1, %s11
    $region7: #{tpu_custom_call.1} parent=1 // loop_footer_branch
      %10 = sbr.rel target = $region3
    $region8: #{tpu_custom_call.1} parent=1 // loop_exit
      _
    %2007 = vsyncpa [#allocation3], 1
    %s2008 = scalar_lea.sflag [#allocation3], 1
    %2009 = vsyncpa %s2008, 1

</llo_original>
